<compile_context>
chip_gen: v6e
topology: v6e:2x2x1
jax: 0.10.0
libtpu: 0.0.40
codegen_flags: <defaults>
</compile_context>

<pallas_src>
import jax
import jax.numpy as jnp
from jax.experimental import pallas as pl
from jax.experimental.pallas import tpu as pltpu

HIDDEN = 256   # encoder width from the module
LANE = 128     # TPU lane width


def _round_up(x, m):
    return (x + m - 1) // m * m


def _pad2(a, rows, cols):
    return jnp.pad(a, ((0, rows - a.shape[0]), (0, cols - a.shape[1])))


# ----------------------------------------------------------------------------
# Kernel
# ----------------------------------------------------------------------------
def deepomix_kernel(
    gene_ref, methyl_ref,          # (bb, G) f32, (bb, M) f32  (unpadded features)
    wg_ref, bg_ref,                # (G, 256) bf16, (1, 256) f32  (BN folded)
    wm_ref, bm_ref,                # (M, 256) bf16, (1, 256) f32
    wfg_ref, wfm_ref,              # (256, Hcp) bf16 each  (wpw@wproc@wc1 folded)
    bc1_ref,                       # (1, Hcp) f32
    wc2_ref, bc2_ref,              # (Hcp, Cp) bf16, (1, Cp) f32
    out_ref,                       # (bb, Cp) f32
):
    f32 = jnp.float32
    bf16 = jnp.bfloat16

    # Gene encoder: Linear (+BN folded) -> ReLU (Dropout = identity in eval)
    g = jnp.dot(gene_ref[...].astype(bf16), wg_ref[...],
                preferred_element_type=f32) + bg_ref[...]
    g = jnp.maximum(g, 0.0)

    # Methyl encoder
    m = jnp.dot(methyl_ref[...].astype(bf16), wm_ref[...],
                preferred_element_type=f32) + bm_ref[...]
    m = jnp.maximum(m, 0.0)

    # Folded pathway -> process -> classifier Linear-1 (two accumulating K=256
    # matmuls; both attention blocks are exact identity scalings, see wrapper).
    c = (jnp.dot(g.astype(bf16), wfg_ref[...], preferred_element_type=f32)
         + jnp.dot(m.astype(bf16), wfm_ref[...], preferred_element_type=f32)
         + bc1_ref[...])
    c = jnp.maximum(c, 0.0)

    # Classifier Linear-2
    out = jnp.dot(c.astype(bf16), wc2_ref[...],
                  preferred_element_type=f32) + bc2_ref[...]
    out_ref[...] = out.astype(out_ref.dtype)


# ----------------------------------------------------------------------------
# Parameter construction (PyTorch-style init) and wrapper-side preparation
# ----------------------------------------------------------------------------
def _linear_init(key, out_dim, in_dim):
    """PyTorch Linear init: U(-1/sqrt(fan_in), 1/sqrt(fan_in))."""
    kw, kb = jax.random.split(key)
    bound = 1.0 / jnp.sqrt(jnp.float32(in_dim))
    w = jax.random.uniform(kw, (out_dim, in_dim), jnp.float32, -bound, bound)
    b = jax.random.uniform(kb, (out_dim,), jnp.float32, -bound, bound)
    return w, b


def make_deepomix_params(key, gene_dim, methyl_dim, num_pathways, num_processes,
                         num_classes, hidden=HIDDEN):
    keys = jax.random.split(key, 10)
    p = {}
    p["wg"], p["bg"] = _linear_init(keys[0], hidden, gene_dim)
    p["wm"], p["bm"] = _linear_init(keys[1], hidden, methyl_dim)
    # BatchNorm1d eval-mode params (PyTorch defaults: gamma=1, beta=0, mean=0, var=1)
    p["bn_g"] = dict(gamma=jnp.ones(hidden), beta=jnp.zeros(hidden),
                     mean=jnp.zeros(hidden), var=jnp.ones(hidden))
    p["bn_m"] = dict(gamma=jnp.ones(hidden), beta=jnp.zeros(hidden),
                     mean=jnp.zeros(hidden), var=jnp.ones(hidden))
    p["wpg"], _ = _linear_init(keys[2], num_pathways, hidden)    # bias=False
    p["wpm"], _ = _linear_init(keys[3], num_pathways, hidden)    # bias=False
    # attention MLPs (used by the full-precision reference; provably no-ops)
    p["wa1"], p["ba1"] = _linear_init(keys[4], num_pathways // 2, num_pathways)
    p["wa2"], p["ba2"] = _linear_init(keys[5], 1, num_pathways // 2)
    p["wproc"], _ = _linear_init(keys[6], num_processes, num_pathways)  # bias=False
    p["wb1"], p["bb1"] = _linear_init(keys[7], num_processes // 2, num_processes)
    p["wb2"], p["bb2"] = _linear_init(keys[8], 1, num_processes // 2)
    kc1, kc2 = jax.random.split(keys[9])
    p["wc1"], p["bc1"] = _linear_init(kc1, 32, num_processes)
    p["wc2"], p["bc2"] = _linear_init(kc2, num_classes, 32)
    return p


def prepare_deepomix(params, eps=1e-5):
    """Inference-only prep: fold BN into encoder weights, algebraically fold
    pathway->process->classifier-Linear1 into two (256, Hcp) matrices (f32
    product, cast to bf16 once), lane-pad classifier dims, cast weights bf16."""
    f32, bf16 = jnp.float32, jnp.bfloat16

    # The attention blocks are exact identities only because their final
    # Linear has out_features == 1 and Softmax(dim=1) of a (B, 1) logit is 1.0.
    assert params["wa2"].shape[0] == 1 and params["wb2"].shape[0] == 1, (
        "attention elimination assumes single-logit softmax (identity scaling)")

    G = params["wg"].shape[1]
    M = params["wm"].shape[1]
    Hc = params["wc1"].shape[0]
    C = params["wc2"].shape[0]
    Hcp, Cp = _round_up(Hc, LANE), _round_up(C, LANE)

    def fold_bn(w, b, bn):
        scale = bn["gamma"] / jnp.sqrt(bn["var"] + eps)          # per output feature
        shift = bn["beta"] - bn["mean"] * scale
        w_eff = w.T * scale[None, :]                             # (in, 256)
        b_eff = b * scale + shift                                # (256,)
        return w_eff, b_eff

    wg_eff, bg_eff = fold_bn(params["wg"], params["bg"], params["bn_g"])
    wm_eff, bm_eff = fold_bn(params["wm"], params["bm"], params["bn_m"])

    # Fold the linear chain (no nonlinearity in between): f32 product, one cast.
    chain = params["wproc"].T @ params["wc1"].T                  # (P, Hc)
    fold_g = params["wpg"].T @ chain                             # (256, Hc)
    fold_m = params["wpm"].T @ chain                             # (256, Hc)

    prep = {
        "wg": wg_eff.astype(bf16),                               # (G, 256)
        "bg": bg_eff[None, :].astype(f32),                       # (1, 256)
        "wm": wm_eff.astype(bf16),                               # (M, 256)
        "bm": bm_eff[None, :].astype(f32),
        "wfg": _pad2(fold_g, HIDDEN, Hcp).astype(bf16),          # (256, Hcp)
        "wfm": _pad2(fold_m, HIDDEN, Hcp).astype(bf16),
        "bc1": _pad2(params["bc1"][None, :], 1, Hcp).astype(f32),
        "wc2": _pad2(params["wc2"].T, Hcp, Cp).astype(bf16),
        "bc2": _pad2(params["bc2"][None, :], 1, Cp).astype(f32),
        "dims": dict(G=G, M=M, C=C, Hcp=Hcp, Cp=Cp),
    }
    return prep


def deepomix_forward(gene_expr, methyl_data, prep, *, block_b=256):
    """Run the Pallas forward. Returns (B, num_classes) f32."""
    d = prep["dims"]
    G, M, Hcp, Cp = d["G"], d["M"], d["Hcp"], d["Cp"]
    B = gene_expr.shape[0]

    # Batch tile: multiple of 8 sublanes (f32 inputs).  Prefer >= 2 grid steps
    # when the batch allows it so v7x's 2 TensorCores both get work.
    Bq = _round_up(B, 8)
    bb = min(_round_up(block_b, 8), Bq)
    if bb == Bq and Bq >= 16:
        bb = _round_up(Bq // 2, 8)
    Bp = _round_up(B, bb)

    # Activations stay f32 and feature-unpadded (cast to bf16 inside the
    # kernel); only the batch dim is padded, and only when needed.
    gene_p = gene_expr if Bp == B else jnp.pad(gene_expr, ((0, Bp - B), (0, 0)))
    methyl_p = methyl_data if Bp == B else jnp.pad(methyl_data, ((0, Bp - B), (0, 0)))

    grid = (Bp // bb,)
    batch_map = lambda i: (i, 0)
    fixed_map = lambda i: (0, 0)     # weights stay resident across grid steps

    in_specs = [
        pl.BlockSpec((bb, G), batch_map),
        pl.BlockSpec((bb, M), batch_map),
        pl.BlockSpec(prep["wg"].shape, fixed_map),
        pl.BlockSpec(prep["bg"].shape, fixed_map),
        pl.BlockSpec(prep["wm"].shape, fixed_map),
        pl.BlockSpec(prep["bm"].shape, fixed_map),
        pl.BlockSpec(prep["wfg"].shape, fixed_map),
        pl.BlockSpec(prep["wfm"].shape, fixed_map),
        pl.BlockSpec(prep["bc1"].shape, fixed_map),
        pl.BlockSpec(prep["wc2"].shape, fixed_map),
        pl.BlockSpec(prep["bc2"].shape, fixed_map),
    ]
    out_specs = pl.BlockSpec((bb, Cp), batch_map)

    weight_keys = ("wg", "bg", "wm", "bm", "wfg", "wfm", "bc1", "wc2", "bc2")
    weight_bytes = sum(int(prep[k].size) * prep[k].dtype.itemsize for k in weight_keys)

    # VMEM budget: double-buffered activation tiles + (conservatively doubled)
    # resident weights + margin; capped at 64 MiB to stay within v7x physical VMEM.
    act_bytes = 2 * bb * (G + M) * 4 + 2 * bb * Cp * 4
    vmem_limit = min(max(act_bytes + 2 * weight_bytes + (8 << 20), 32 << 20), 64 << 20)

    flops = 2 * Bp * (G * HIDDEN + M * HIDDEN + 2 * HIDDEN * Hcp + Hcp * Cp)
    bytes_accessed = Bp * (G + M) * 4 + Bp * Cp * 4 + weight_bytes

    out_p = pl.pallas_call(
        deepomix_kernel,
        out_shape=jax.ShapeDtypeStruct((Bp, Cp), jnp.float32),
        grid=grid,
        in_specs=in_specs,
        out_specs=out_specs,
        compiler_params=pltpu.CompilerParams(
            dimension_semantics=("parallel",),
            vmem_limit_bytes=int(vmem_limit)),
        cost_estimate=pl.CostEstimate(
            flops=flops, transcendentals=0, bytes_accessed=bytes_accessed),
    )(gene_p, methyl_p,
      prep["wg"], prep["bg"], prep["wm"], prep["bm"],
      prep["wfg"], prep["wfm"], prep["bc1"],
      prep["wc2"], prep["bc2"])

    return out_p[:B, :d["C"]]


# ----------------------------------------------------------------------------
# References
# ----------------------------------------------------------------------------
def deepomix_prep_reference(gene_expr, methyl_data, prep):
    """Plain-jnp mirror of the kernel math (bf16 operands, f32 accumulation)."""
    f32, bf16 = jnp.float32, jnp.bfloat16
    d = prep["dims"]
    dot = lambda a, b: jnp.dot(a, b, preferred_element_type=f32)

    g = jnp.maximum(dot(gene_expr.astype(bf16), prep["wg"]) + prep["bg"], 0.0)
    m = jnp.maximum(dot(methyl_data.astype(bf16), prep["wm"]) + prep["bm"], 0.0)
    c = jnp.maximum(dot(g.astype(bf16), prep["wfg"])
                    + dot(m.astype(bf16), prep["wfm"]) + prep["bc1"], 0.0)
    out = dot(c.astype(bf16), prep["wc2"]) + prep["bc2"]
    return out[:, :d["C"]]


def deepomix_reference(gene_expr, methyl_data, params):
    """Full-precision faithful reference of the PyTorch module (incl. attention)."""
    eps = 1e-5

    def enc(x, w, b, bn):
        y = x @ w.T + b
        y = (y - bn["mean"]) / jnp.sqrt(bn["var"] + eps) * bn["gamma"] + bn["beta"]
        return jax.nn.relu(y)

    g = enc(gene_expr, params["wg"], params["bg"], params["bn_g"])
    m = enc(methyl_data, params["wm"], params["bm"], params["bn_m"])
    pw = g @ params["wpg"].T + m @ params["wpm"].T

    def attn(x, w1, b1, w2, b2):
        h = jax.nn.relu(x @ w1.T + b1)
        logits = h @ w2.T + b2
        w = jax.nn.softmax(logits, axis=1)      # (B,1) -> identically 1.0
        return x * w

    pw_att = attn(pw, params["wa1"], params["ba1"], params["wa2"], params["ba2"])
    proc = pw_att @ params["wproc"].T
    proc_att = attn(proc, params["wb1"], params["bb1"], params["wb2"], params["bb2"])
    c = jax.nn.relu(proc_att @ params["wc1"].T + params["bc1"])
    return c @ params["wc2"].T + params["bc2"]


# ----------------------------------------------------------------------------
if __name__ == "__main__":
    # Feature dims match the module's generated data (1000 genes, 800 methyl,
    # 50 pathways, 30 processes); small batch for the smoke test.
    B, gene_dim, methyl_dim = 32, 1000, 800
    num_pathways, num_processes, num_classes = 50, 30, 4

    key = jax.random.PRNGKey(0)
    k_gene, k_methyl, k_params = jax.random.split(key, 3)
    gene_expr = jax.random.normal(k_gene, (B, gene_dim), jnp.float32)
    methyl_data = jax.random.normal(k_methyl, (B, methyl_dim), jnp.float32)

    params = make_deepomix_params(k_params, gene_dim, methyl_dim,
                                  num_pathways, num_processes, num_classes)
    prep = prepare_deepomix(params)

    # Default block_b=256 -> the wrapper caps the tile so this batch still
    # produces a 2-step grid (exercises the pipeline / v7x megacore path).
    out = deepomix_forward(gene_expr, methyl_data, prep)
    out = jax.block_until_ready(out)
    assert out.shape == (B, num_classes)

    ref_q = deepomix_prep_reference(gene_expr, methyl_data, prep)   # same numerics
    ref_f = deepomix_reference(gene_expr, methyl_data, params)      # f32 module math

    err_q = float(jnp.max(jnp.abs(out - ref_q)))
    err_f = float(jnp.max(jnp.abs(out - ref_f)))
    assert err_q < 1e-3, f"kernel vs folded-bf16 reference mismatch: {err_q}"
    assert err_f < 5e-2, f"kernel vs f32 module reference mismatch: {err_f}"

    print("KERNEL_OK")
</pallas_src>

<mosaic_0001>
module attributes {stable_mosaic.version = 11 : i64} {
  func.func @deepomix_kernel(%arg0: i32, %arg1: memref<16x1000xf32, #tpu.memory_space<vmem>>, %arg2: memref<16x800xf32, #tpu.memory_space<vmem>>, %arg3: memref<1000x256xbf16, #tpu.memory_space<vmem>>, %arg4: memref<1x256xf32, #tpu.memory_space<vmem>>, %arg5: memref<800x256xbf16, #tpu.memory_space<vmem>>, %arg6: memref<1x256xf32, #tpu.memory_space<vmem>>, %arg7: memref<256x128xbf16, #tpu.memory_space<vmem>>, %arg8: memref<256x128xbf16, #tpu.memory_space<vmem>>, %arg9: memref<1x128xf32, #tpu.memory_space<vmem>>, %arg10: memref<128x128xbf16, #tpu.memory_space<vmem>>, %arg11: memref<1x128xf32, #tpu.memory_space<vmem>>, %arg12: memref<16x128xf32, #tpu.memory_space<vmem>>) attributes {dimension_semantics = [#tpu.dimension_semantics<parallel>], iteration_bounds = array<i64: 2>, scalar_prefetch = 0 : i64, scratch_operands = 0 : i64, tpu.core_type = #tpu.core_type<tc>, window_params = [{transform_indices = @transform_0, window_bounds = array<i64: 16, 1000>}, {transform_indices = @transform_1, window_bounds = array<i64: 16, 800>}, {pipeline_mode = #tpu.pipeline_mode<synchronous>, transform_indices = @transform_2, window_bounds = array<i64: 1000, 256>}, {pipeline_mode = #tpu.pipeline_mode<synchronous>, transform_indices = @transform_3, window_bounds = array<i64: 1, 256>}, {pipeline_mode = #tpu.pipeline_mode<synchronous>, transform_indices = @transform_4, window_bounds = array<i64: 800, 256>}, {pipeline_mode = #tpu.pipeline_mode<synchronous>, transform_indices = @transform_5, window_bounds = array<i64: 1, 256>}, {pipeline_mode = #tpu.pipeline_mode<synchronous>, transform_indices = @transform_6, window_bounds = array<i64: 256, 128>}, {pipeline_mode = #tpu.pipeline_mode<synchronous>, transform_indices = @transform_7, window_bounds = array<i64: 256, 128>}, {pipeline_mode = #tpu.pipeline_mode<synchronous>, transform_indices = @transform_8, window_bounds = array<i64: 1, 128>}, {pipeline_mode = #tpu.pipeline_mode<synchronous>, transform_indices = @transform_9, window_bounds = array<i64: 128, 128>}, {pipeline_mode = #tpu.pipeline_mode<synchronous>, transform_indices = @transform_10, window_bounds = array<i64: 1, 128>}, {transform_indices = @transform_11, window_bounds = array<i64: 16, 128>}]} {
    %c0 = arith.constant 0 : index
    %c0_0 = arith.constant 0 : index
    %0 = vector.load %arg1[%c0, %c0_0] : memref<16x1000xf32, #tpu.memory_space<vmem>>, vector<16x1000xf32>
    %1 = arith.truncf %0 : vector<16x1000xf32> to vector<16x1000xbf16>
    %c0_1 = arith.constant 0 : index
    %c0_2 = arith.constant 0 : index
    %2 = vector.load %arg3[%c0_1, %c0_2] : memref<1000x256xbf16, #tpu.memory_space<vmem>>, vector<1000x256xbf16>
    %cst = arith.constant dense<0.000000e+00> : vector<16x256xf32>
    %3 = tpu.matmul %1, %2, %cst {dimension_numbers = #tpu.dot_dimension_numbers<[1], [0], [0], [1], [0, 0, 1, 1], [], []>} : vector<16x1000xbf16>, vector<1000x256xbf16>, vector<16x256xf32> -> vector<16x256xf32>
    %c0_3 = arith.constant 0 : index
    %c0_4 = arith.constant 0 : index
    %4 = vector.load %arg4[%c0_3, %c0_4] : memref<1x256xf32, #tpu.memory_space<vmem>>, vector<1x256xf32>
    %5 = vector.broadcast %4 : vector<1x256xf32> to vector<16x256xf32>
    %6 = arith.addf %3, %5 : vector<16x256xf32>
    %cst_5 = arith.constant 0.000000e+00 : f32
    %7 = vector.broadcast %cst_5 : f32 to vector<16x256xf32>
    %8 = arith.maximumf %6, %7 : vector<16x256xf32>
    %c0_6 = arith.constant 0 : index
    %c0_7 = arith.constant 0 : index
    %9 = vector.load %arg2[%c0_6, %c0_7] : memref<16x800xf32, #tpu.memory_space<vmem>>, vector<16x800xf32>
    %10 = arith.truncf %9 : vector<16x800xf32> to vector<16x800xbf16>
    %c0_8 = arith.constant 0 : index
    %c0_9 = arith.constant 0 : index
    %11 = vector.load %arg5[%c0_8, %c0_9] : memref<800x256xbf16, #tpu.memory_space<vmem>>, vector<800x256xbf16>
    %cst_10 = arith.constant dense<0.000000e+00> : vector<16x256xf32>
    %12 = tpu.matmul %10, %11, %cst_10 {dimension_numbers = #tpu.dot_dimension_numbers<[1], [0], [0], [1], [0, 0, 1, 1], [], []>} : vector<16x800xbf16>, vector<800x256xbf16>, vector<16x256xf32> -> vector<16x256xf32>
    %c0_11 = arith.constant 0 : index
    %c0_12 = arith.constant 0 : index
    %13 = vector.load %arg6[%c0_11, %c0_12] : memref<1x256xf32, #tpu.memory_space<vmem>>, vector<1x256xf32>
    %14 = vector.broadcast %13 : vector<1x256xf32> to vector<16x256xf32>
    %15 = arith.addf %12, %14 : vector<16x256xf32>
    %cst_13 = arith.constant 0.000000e+00 : f32
    %16 = vector.broadcast %cst_13 : f32 to vector<16x256xf32>
    %17 = arith.maximumf %15, %16 : vector<16x256xf32>
    %18 = arith.truncf %8 : vector<16x256xf32> to vector<16x256xbf16>
    %c0_14 = arith.constant 0 : index
    %c0_15 = arith.constant 0 : index
    %19 = vector.load %arg7[%c0_14, %c0_15] : memref<256x128xbf16, #tpu.memory_space<vmem>>, vector<256x128xbf16>
    %cst_16 = arith.constant dense<0.000000e+00> : vector<16x128xf32>
    %20 = tpu.matmul %18, %19, %cst_16 {dimension_numbers = #tpu.dot_dimension_numbers<[1], [0], [0], [1], [0, 0, 1, 1], [], []>} : vector<16x256xbf16>, vector<256x128xbf16>, vector<16x128xf32> -> vector<16x128xf32>
    %21 = arith.truncf %17 : vector<16x256xf32> to vector<16x256xbf16>
    %c0_17 = arith.constant 0 : index
    %c0_18 = arith.constant 0 : index
    %22 = vector.load %arg8[%c0_17, %c0_18] : memref<256x128xbf16, #tpu.memory_space<vmem>>, vector<256x128xbf16>
    %cst_19 = arith.constant dense<0.000000e+00> : vector<16x128xf32>
    %23 = tpu.matmul %21, %22, %cst_19 {dimension_numbers = #tpu.dot_dimension_numbers<[1], [0], [0], [1], [0, 0, 1, 1], [], []>} : vector<16x256xbf16>, vector<256x128xbf16>, vector<16x128xf32> -> vector<16x128xf32>
    %24 = arith.addf %20, %23 : vector<16x128xf32>
    %c0_20 = arith.constant 0 : index
    %c0_21 = arith.constant 0 : index
    %25 = vector.load %arg9[%c0_20, %c0_21] : memref<1x128xf32, #tpu.memory_space<vmem>>, vector<1x128xf32>
    %26 = vector.broadcast %25 : vector<1x128xf32> to vector<16x128xf32>
    %27 = arith.addf %24, %26 : vector<16x128xf32>
    %cst_22 = arith.constant 0.000000e+00 : f32
    %28 = vector.broadcast %cst_22 : f32 to vector<16x128xf32>
    %29 = arith.maximumf %27, %28 : vector<16x128xf32>
    %30 = arith.truncf %29 : vector<16x128xf32> to vector<16x128xbf16>
    %c0_23 = arith.constant 0 : index
    %c0_24 = arith.constant 0 : index
    %31 = vector.load %arg10[%c0_23, %c0_24] : memref<128x128xbf16, #tpu.memory_space<vmem>>, vector<128x128xbf16>
    %cst_25 = arith.constant dense<0.000000e+00> : vector<16x128xf32>
    %32 = tpu.matmul %30, %31, %cst_25 {dimension_numbers = #tpu.dot_dimension_numbers<[1], [0], [0], [1], [0, 0, 1, 1], [], []>} : vector<16x128xbf16>, vector<128x128xbf16>, vector<16x128xf32> -> vector<16x128xf32>
    %c0_26 = arith.constant 0 : index
    %c0_27 = arith.constant 0 : index
    %33 = vector.load %arg11[%c0_26, %c0_27] : memref<1x128xf32, #tpu.memory_space<vmem>>, vector<1x128xf32>
    %34 = vector.broadcast %33 : vector<1x128xf32> to vector<16x128xf32>
    %35 = arith.addf %32, %34 : vector<16x128xf32>
    %c0_28 = arith.constant 0 : index
    %c0_29 = arith.constant 0 : index
    %36 = vector.load %arg12[%c0_28, %c0_29] : memref<16x128xf32, #tpu.memory_space<vmem>>, vector<16x128xf32>
    tpu.vector_store %arg12[%c0_28, %c0_29], %35 {strides = array<i32>} : memref<16x128xf32, #tpu.memory_space<vmem>>, vector<16x128xf32>,
    return
  }
  func.func @transform_0(%arg0: i32) -> (i32, i32) {
    %c0_i32 = arith.constant 0 : i32
    %c0_i32_0 = arith.constant 0 : i32
    return %arg0, %c0_i32 : i32, i32
  }
  func.func @transform_1(%arg0: i32) -> (i32, i32) {
    %c0_i32 = arith.constant 0 : i32
    %c0_i32_0 = arith.constant 0 : i32
    return %arg0, %c0_i32 : i32, i32
  }
  func.func @transform_2(%arg0: i32) -> (i32, i32) {
    %c0_i32 = arith.constant 0 : i32
    %c0_i32_0 = arith.constant 0 : i32
    %c0_i32_1 = arith.constant 0 : i32
    return %c0_i32, %c0_i32_0 : i32, i32
  }
  func.func @transform_3(%arg0: i32) -> (i32, i32) {
    %c0_i32 = arith.constant 0 : i32
    %c0_i32_0 = arith.constant 0 : i32
    %c0_i32_1 = arith.constant 0 : i32
    return %c0_i32, %c0_i32_0 : i32, i32
  }
  func.func @transform_4(%arg0: i32) -> (i32, i32) {
    %c0_i32 = arith.constant 0 : i32
    %c0_i32_0 = arith.constant 0 : i32
    %c0_i32_1 = arith.constant 0 : i32
    return %c0_i32, %c0_i32_0 : i32, i32
  }
  func.func @transform_5(%arg0: i32) -> (i32, i32) {
    %c0_i32 = arith.constant 0 : i32
    %c0_i32_0 = arith.constant 0 : i32
    %c0_i32_1 = arith.constant 0 : i32
    return %c0_i32, %c0_i32_0 : i32, i32
  }
  func.func @transform_6(%arg0: i32) -> (i32, i32) {
    %c0_i32 = arith.constant 0 : i32
    %c0_i32_0 = arith.constant 0 : i32
    %c0_i32_1 = arith.constant 0 : i32
    return %c0_i32, %c0_i32_0 : i32, i32
  }
  func.func @transform_7(%arg0: i32) -> (i32, i32) {
    %c0_i32 = arith.constant 0 : i32
    %c0_i32_0 = arith.constant 0 : i32
    %c0_i32_1 = arith.constant 0 : i32
    return %c0_i32, %c0_i32_0 : i32, i32
  }
  func.func @transform_8(%arg0: i32) -> (i32, i32) {
    %c0_i32 = arith.constant 0 : i32
    %c0_i32_0 = arith.constant 0 : i32
    %c0_i32_1 = arith.constant 0 : i32
    return %c0_i32, %c0_i32_0 : i32, i32
  }
  func.func @transform_9(%arg0: i32) -> (i32, i32) {
    %c0_i32 = arith.constant 0 : i32
    %c0_i32_0 = arith.constant 0 : i32
    %c0_i32_1 = arith.constant 0 : i32
    return %c0_i32, %c0_i32_0 : i32, i32
  }
  func.func @transform_10(%arg0: i32) -> (i32, i32) {
    %c0_i32 = arith.constant 0 : i32
    %c0_i32_0 = arith.constant 0 : i32
    %c0_i32_1 = arith.constant 0 : i32
    return %c0_i32, %c0_i32_0 : i32, i32
  }
  func.func @transform_11(%arg0: i32) -> (i32, i32) {
    %c0_i32 = arith.constant 0 : i32
    %c0_i32_0 = arith.constant 0 : i32
    return %arg0, %c0_i32 : i32, i32
  }
}

</mosaic_0001>

<llo_original>
// kernel: tpu_custom_call.1
$region0: #{tpu_custom_call.1}
  #allocation0 [shape = 'u32[]', space=smem, size = 0x4, offset = 0x4, fixed_abs, tag = 'smem constant byte address 0x4 - core index']
  #allocation1 [shape = 'u32[144,128]{1,0:T(1,128)}', space=vmem, size = 0x12000, scoped, tag = 'internal scratch']
  %s0 = inlined_call_operand.hbm [shape: f32[32,1000], index: 0, kind: input, shape index: {}]
  %s1 = inlined_call_operand.hbm [shape: f32[32,800], index: 1, kind: input, shape index: {}]
  %s2 = inlined_call_operand.hbm [shape: bf16[1000,256], index: 2, kind: input, shape index: {}]
  %s3 = inlined_call_operand.vmem [shape: f32[1,256], index: 3, kind: input, shape index: {}]
  %s4 = inlined_call_operand.hbm [shape: bf16[800,256], index: 4, kind: input, shape index: {}]
  %s5 = inlined_call_operand.vmem [shape: f32[1,256], index: 5, kind: input, shape index: {}]
  %s6 = inlined_call_operand.hbm [shape: bf16[256,128], index: 6, kind: input, shape index: {}]
  %s7 = inlined_call_operand.hbm [shape: bf16[256,128], index: 7, kind: input, shape index: {}]
  %s8 = inlined_call_operand.vmem [shape: f32[1,128], index: 8, kind: input, shape index: {}]
  %s9 = inlined_call_operand.hbm [shape: bf16[128,128], index: 9, kind: input, shape index: {}]
  %s10 = inlined_call_operand.vmem [shape: f32[1,128], index: 10, kind: input, shape index: {}]
  %s11 = inlined_call_operand.hbm [shape: f32[32,128], index: 11, kind: output, shape index: {}]
  %s12 = sld [smem:[#allocation0]]
  $region105: #{tpu_custom_call.1} parent=0
    _
  %s14 = ssub.s32 1, %s12
  %s15 = scalar_select 0, %s14, %s12
  $region1: #{tpu_custom_call.1} parent=0
    #allocation2 [shape = 'u8[131072]{0}', space=vmem, size = 0x20000, scoped, tag = 'input window, operand 0']
    #allocation3 [shape = 's32[2]{0}', space=sflag, size = 0x8, scoped, tag = 'scoped memory for tpu_custom_call.1']
    #allocation4 [shape = 's32[2]{0}', space=sflag, size = 0x8, scoped, tag = 'scoped memory for tpu_custom_call.1']
    #allocation5 [shape = 'u8[114688]{0}', space=vmem, size = 0x1c000, scoped, tag = 'input window, operand 1']
    #allocation6 [shape = 's32[2]{0}', space=sflag, size = 0x8, scoped, tag = 'scoped memory for tpu_custom_call.1']
    #allocation7 [shape = 'u8[512000]{0}', space=vmem, size = 0x7d000, scoped, tag = 'input window, operand 2, single buffered']
    #allocation8 [shape = 'u8[409600]{0}', space=vmem, size = 0x64000, scoped, tag = 'input window, operand 4, single buffered']
    #allocation9 [shape = 's32[1]{0}', space=sflag, size = 0x4, scoped, tag = 'scoped memory for tpu_custom_call.1']
    #allocation10 [shape = 'u8[65536]{0}', space=vmem, size = 0x10000, scoped, tag = 'input window, operand 6, single buffered']
    #allocation11 [shape = 'u8[65536]{0}', space=vmem, size = 0x10000, scoped, tag = 'input window, operand 7, single buffered']
    #allocation12 [shape = 's32[1]{0}', space=sflag, size = 0x4, scoped, tag = 'scoped memory for tpu_custom_call.1']
    #allocation13 [shape = 'u8[32768]{0}', space=vmem, size = 0x8000, scoped, tag = 'input window, operand 9, single buffered']
    #allocation14 [shape = 'u8[16384]{0}', space=vmem, size = 0x4000, scoped, tag = 'output window, operand 0']
    %16 = vsyncpa [#allocation3], 0
    %s17 = scalar_lea.sflag [#allocation3], 1
    %18 = vsyncpa %s17, 0
    %19 = vsyncpa [#allocation6], 0
    %s20 = scalar_lea.sflag [#allocation6], 1
    %21 = vsyncpa %s20, 0
    %22 = vsyncpa [#allocation9], 0
    %23 = vsyncpa [#allocation12], 0
    %24 = vsyncpa [#allocation4], 0
    %s25 = scalar_lea.sflag [#allocation4], 1
    %26 = vsyncpa %s25, 0
    loop: start=0, step=1, limit=4
    $region2: #{tpu_custom_call.1} parent=1 // loop_pre_header
      _
    $region3: #{tpu_custom_call.1} parent=1 // loop_header
      %s28 = sphi 0, %s32
      %p29 = scmp.ge.s32.totalorder %s28, 4
      %s38 = sphi 0, %s40
      %s41 = sphi 0, %s38
      %s42 = sphi 0, %s41
      %s58 = sphi 0, %s42
      %s64 = sphi 0, %s66
      %s67 = sphi 0, %s64
      %s68 = sphi 0, %s67
      %s84 = sphi 0, %s68
      %s88 = sphi 0, %s88
      %s90 = sphi 0, %s88
      %s91 = sphi 0, %s90
      %s105 = sphi 0, %s91
      %s109 = sphi 0, %s109
      %s111 = sphi 0, %s109
      %s112 = sphi 0, %s111
      %s126 = sphi 0, %s112
      %s130 = sphi 0, %s130
      %s132 = sphi 0, %s130
      %s133 = sphi 0, %s132
      %s147 = sphi 0, %s133
      %s151 = sphi 0, %s151
      %s153 = sphi 0, %s151
      %s154 = sphi 0, %s153
      %s168 = sphi 0, %s154
      %s172 = sphi 0, %s172
      %s174 = sphi 0, %s172
      %s175 = sphi 0, %s174
      %s189 = sphi 0, %s175
      %s193 = sphi 0, %s193
      %s195 = sphi 0, %s193
      %s196 = sphi 0, %s195
      %s210 = sphi 0, %s196
      %s214 = sphi 0, %s214
      %s216 = sphi 0, %s214
      %s217 = sphi 0, %s216
      %s231 = sphi 0, %s217
      %s235 = sphi 0, %s235
      %s237 = sphi 0, %s235
      %s238 = sphi 0, %s237
      %s252 = sphi 0, %s238
      %s256 = sphi 0, %s256
      %s258 = sphi 0, %s256
      %s259 = sphi 0, %s258
      %s273 = sphi 0, %s259
      %s279 = sphi 0, %s281
      %s282 = sphi 0, %s279
      %s283 = sphi 0, %s282
      %s299 = sphi 0, %s283
    $region4: #{tpu_custom_call.1} parent=1 // loop_header_branch
      %31 = sbr.rel (%p29) target = $region8
    $region5: #{tpu_custom_call.1} parent=1 // loop_body
      %s33 = ssub.s32 %s28, 1
      %s34 = ssub.s32 %s28, 2
      %s35 = sadd.s32 %s28, 1
      %s36 = ssub.s32 %s28, %s35
      %p37 = scmp.eq.s32.totalorder %s36, 0
      %s39 = sadd.s32 %s38, 1
      %s40 = scalar_select %p37, %s38, %s39
      %p43 = pneg %p37
      %p44 = scmp.eq.s32.totalorder %s28, 1
      %p45 = por %p43, %p44
      %p46 = scmp.ne.s32.totalorder %s38, %s41
      %p47 = scmp.eq.s32.totalorder %s28, 0
      %p48 = por %p46, %p47
      %p49 = scmp.ne.s32.totalorder %s38, %s41
      %p50 = scmp.eq.s32.totalorder %s33, 1
      %p51 = por %p49, %p50
      %p52 = scmp.ne.s32.totalorder %s41, %s42
      %p53 = scmp.eq.s32.totalorder %s33, 0
      %p54 = por %p52, %p53
      %p55 = scmp.ne.s32.totalorder %s41, %s42
      %p56 = scmp.eq.s32.totalorder %s34, 1
      %p57 = por %p55, %p56
      %p59 = scmp.ne.s32.totalorder %s42, %s58
      %p60 = scmp.eq.s32.totalorder %s34, 0
      %p61 = por %p59, %p60
      %s62 = ssub.s32 %s28, %s35
      %p63 = scmp.eq.s32.totalorder %s62, 0
      %s65 = sadd.s32 %s64, 1
      %s66 = scalar_select %p63, %s64, %s65
      %p69 = pneg %p63
      %p70 = scmp.eq.s32.totalorder %s28, 1
      %p71 = por %p69, %p70
      %p72 = scmp.ne.s32.totalorder %s64, %s67
      %p73 = scmp.eq.s32.totalorder %s28, 0
      %p74 = por %p72, %p73
      %p75 = scmp.ne.s32.totalorder %s64, %s67
      %p76 = scmp.eq.s32.totalorder %s33, 1
      %p77 = por %p75, %p76
      %p78 = scmp.ne.s32.totalorder %s67, %s68
      %p79 = scmp.eq.s32.totalorder %s33, 0
      %p80 = por %p78, %p79
      %p81 = scmp.ne.s32.totalorder %s67, %s68
      %p82 = scmp.eq.s32.totalorder %s34, 1
      %p83 = por %p81, %p82
      %p85 = scmp.ne.s32.totalorder %s68, %s84
      %p86 = scmp.eq.s32.totalorder %s34, 0
      %p87 = por %p85, %p86
      %s89 = sadd.s32 %s88, 1
      %p92 = scmp.eq.s32.totalorder %s28, 1
      %p93 = scmp.ne.s32.totalorder %s88, %s90
      %p94 = scmp.eq.s32.totalorder %s28, 0
      %p95 = por %p93, %p94
      %p96 = scmp.ne.s32.totalorder %s88, %s90
      %p97 = scmp.eq.s32.totalorder %s33, 1
      %p98 = por %p96, %p97
      %p99 = scmp.ne.s32.totalorder %s90, %s91
      %p100 = scmp.eq.s32.totalorder %s33, 0
      %p101 = por %p99, %p100
      %p102 = scmp.ne.s32.totalorder %s90, %s91
      %p103 = scmp.eq.s32.totalorder %s34, 1
      %p104 = por %p102, %p103
      %p106 = scmp.ne.s32.totalorder %s91, %s105
      %p107 = scmp.eq.s32.totalorder %s34, 0
      %p108 = por %p106, %p107
      %s110 = sadd.s32 %s109, 1
      %p113 = scmp.eq.s32.totalorder %s28, 1
      %p114 = scmp.ne.s32.totalorder %s109, %s111
      %p115 = scmp.eq.s32.totalorder %s28, 0
      %p116 = por %p114, %p115
      %p117 = scmp.ne.s32.totalorder %s109, %s111
      %p118 = scmp.eq.s32.totalorder %s33, 1
      %p119 = por %p117, %p118
      %p120 = scmp.ne.s32.totalorder %s111, %s112
      %p121 = scmp.eq.s32.totalorder %s33, 0
      %p122 = por %p120, %p121
      %p123 = scmp.ne.s32.totalorder %s111, %s112
      %p124 = scmp.eq.s32.totalorder %s34, 1
      %p125 = por %p123, %p124
      %p127 = scmp.ne.s32.totalorder %s112, %s126
      %p128 = scmp.eq.s32.totalorder %s34, 0
      %p129 = por %p127, %p128
      %s131 = sadd.s32 %s130, 1
      %p134 = scmp.eq.s32.totalorder %s28, 1
      %p135 = scmp.ne.s32.totalorder %s130, %s132
      %p136 = scmp.eq.s32.totalorder %s28, 0
      %p137 = por %p135, %p136
      %p138 = scmp.ne.s32.totalorder %s130, %s132
      %p139 = scmp.eq.s32.totalorder %s33, 1
      %p140 = por %p138, %p139
      %p141 = scmp.ne.s32.totalorder %s132, %s133
      %p142 = scmp.eq.s32.totalorder %s33, 0
      %p143 = por %p141, %p142
      %p144 = scmp.ne.s32.totalorder %s132, %s133
      %p145 = scmp.eq.s32.totalorder %s34, 1
      %p146 = por %p144, %p145
      %p148 = scmp.ne.s32.totalorder %s133, %s147
      %p149 = scmp.eq.s32.totalorder %s34, 0
      %p150 = por %p148, %p149
      %s152 = sadd.s32 %s151, 1
      %p155 = scmp.eq.s32.totalorder %s28, 1
      %p156 = scmp.ne.s32.totalorder %s151, %s153
      %p157 = scmp.eq.s32.totalorder %s28, 0
      %p158 = por %p156, %p157
      %p159 = scmp.ne.s32.totalorder %s151, %s153
      %p160 = scmp.eq.s32.totalorder %s33, 1
      %p161 = por %p159, %p160
      %p162 = scmp.ne.s32.totalorder %s153, %s154
      %p163 = scmp.eq.s32.totalorder %s33, 0
      %p164 = por %p162, %p163
      %p165 = scmp.ne.s32.totalorder %s153, %s154
      %p166 = scmp.eq.s32.totalorder %s34, 1
      %p167 = por %p165, %p166
      %p169 = scmp.ne.s32.totalorder %s154, %s168
      %p170 = scmp.eq.s32.totalorder %s34, 0
      %p171 = por %p169, %p170
      %s173 = sadd.s32 %s172, 1
      %p176 = scmp.eq.s32.totalorder %s28, 1
      %p177 = scmp.ne.s32.totalorder %s172, %s174
      %p178 = scmp.eq.s32.totalorder %s28, 0
      %p179 = por %p177, %p178
      %p180 = scmp.ne.s32.totalorder %s172, %s174
      %p181 = scmp.eq.s32.totalorder %s33, 1
      %p182 = por %p180, %p181
      %p183 = scmp.ne.s32.totalorder %s174, %s175
      %p184 = scmp.eq.s32.totalorder %s33, 0
      %p185 = por %p183, %p184
      %p186 = scmp.ne.s32.totalorder %s174, %s175
      %p187 = scmp.eq.s32.totalorder %s34, 1
      %p188 = por %p186, %p187
      %p190 = scmp.ne.s32.totalorder %s175, %s189
      %p191 = scmp.eq.s32.totalorder %s34, 0
      %p192 = por %p190, %p191
      %s194 = sadd.s32 %s193, 1
      %p197 = scmp.eq.s32.totalorder %s28, 1
      %p198 = scmp.ne.s32.totalorder %s193, %s195
      %p199 = scmp.eq.s32.totalorder %s28, 0
      %p200 = por %p198, %p199
      %p201 = scmp.ne.s32.totalorder %s193, %s195
      %p202 = scmp.eq.s32.totalorder %s33, 1
      %p203 = por %p201, %p202
      %p204 = scmp.ne.s32.totalorder %s195, %s196
      %p205 = scmp.eq.s32.totalorder %s33, 0
      %p206 = por %p204, %p205
      %p207 = scmp.ne.s32.totalorder %s195, %s196
      %p208 = scmp.eq.s32.totalorder %s34, 1
      %p209 = por %p207, %p208
      %p211 = scmp.ne.s32.totalorder %s196, %s210
      %p212 = scmp.eq.s32.totalorder %s34, 0
      %p213 = por %p211, %p212
      %s215 = sadd.s32 %s214, 1
      %p218 = scmp.eq.s32.totalorder %s28, 1
      %p219 = scmp.ne.s32.totalorder %s214, %s216
      %p220 = scmp.eq.s32.totalorder %s28, 0
      %p221 = por %p219, %p220
      %p222 = scmp.ne.s32.totalorder %s214, %s216
      %p223 = scmp.eq.s32.totalorder %s33, 1
      %p224 = por %p222, %p223
      %p225 = scmp.ne.s32.totalorder %s216, %s217
      %p226 = scmp.eq.s32.totalorder %s33, 0
      %p227 = por %p225, %p226
      %p228 = scmp.ne.s32.totalorder %s216, %s217
      %p229 = scmp.eq.s32.totalorder %s34, 1
      %p230 = por %p228, %p229
      %p232 = scmp.ne.s32.totalorder %s217, %s231
      %p233 = scmp.eq.s32.totalorder %s34, 0
      %p234 = por %p232, %p233
      %s236 = sadd.s32 %s235, 1
      %p239 = scmp.eq.s32.totalorder %s28, 1
      %p240 = scmp.ne.s32.totalorder %s235, %s237
      %p241 = scmp.eq.s32.totalorder %s28, 0
      %p242 = por %p240, %p241
      %p243 = scmp.ne.s32.totalorder %s235, %s237
      %p244 = scmp.eq.s32.totalorder %s33, 1
      %p245 = por %p243, %p244
      %p246 = scmp.ne.s32.totalorder %s237, %s238
      %p247 = scmp.eq.s32.totalorder %s33, 0
      %p248 = por %p246, %p247
      %p249 = scmp.ne.s32.totalorder %s237, %s238
      %p250 = scmp.eq.s32.totalorder %s34, 1
      %p251 = por %p249, %p250
      %p253 = scmp.ne.s32.totalorder %s238, %s252
      %p254 = scmp.eq.s32.totalorder %s34, 0
      %p255 = por %p253, %p254
      %s257 = sadd.s32 %s256, 1
      %p260 = scmp.eq.s32.totalorder %s28, 1
      %p261 = scmp.ne.s32.totalorder %s256, %s258
      %p262 = scmp.eq.s32.totalorder %s28, 0
      %p263 = por %p261, %p262
      %p264 = scmp.ne.s32.totalorder %s256, %s258
      %p265 = scmp.eq.s32.totalorder %s33, 1
      %p266 = por %p264, %p265
      %p267 = scmp.ne.s32.totalorder %s258, %s259
      %p268 = scmp.eq.s32.totalorder %s33, 0
      %p269 = por %p267, %p268
      %p270 = scmp.ne.s32.totalorder %s258, %s259
      %p271 = scmp.eq.s32.totalorder %s34, 1
      %p272 = por %p270, %p271
      %p274 = scmp.ne.s32.totalorder %s259, %s273
      %p275 = scmp.eq.s32.totalorder %s34, 0
      %p276 = por %p274, %p275
      %s277 = ssub.s32 %s28, %s35
      %p278 = scmp.eq.s32.totalorder %s277, 0
      %s280 = sadd.s32 %s279, 1
      %s281 = scalar_select %p278, %s279, %s280
      %p284 = pneg %p278
      %p285 = scmp.eq.s32.totalorder %s28, 1
      %p286 = por %p284, %p285
      %p287 = scmp.ne.s32.totalorder %s279, %s282
      %p288 = scmp.eq.s32.totalorder %s28, 0
      %p289 = por %p287, %p288
      %p290 = scmp.ne.s32.totalorder %s279, %s282
      %p291 = scmp.eq.s32.totalorder %s33, 1
      %p292 = por %p290, %p291
      %p293 = scmp.ne.s32.totalorder %s282, %s283
      %p294 = scmp.eq.s32.totalorder %s33, 0
      %p295 = por %p293, %p294
      %p296 = scmp.ne.s32.totalorder %s282, %s283
      %p297 = scmp.eq.s32.totalorder %s34, 1
      %p298 = por %p296, %p297
      %p300 = scmp.ne.s32.totalorder %s283, %s299
      %p301 = scmp.eq.s32.totalorder %s34, 0
      %p302 = por %p300, %p301
      %p303 = scmp.le.s32.totalorder 1, %s28
      %p304 = scmp.lt.s32.totalorder %s28, 3
      %p305 = pnand %p303, %p304
      %p306 = pneg %p305
      // Predicated region
      $region9: #{tpu_custom_call.1} parent=5 // pred_check
        _
      $region10: #{tpu_custom_call.1} parent=5 // pred_check_branch
        %308 = sbr.rel (%p305) target = $region12
      $region11: #{tpu_custom_call.1} parent=5 // pred_region
        %s309 = ssub.s32 %s28, 1
        // Predicated region
        $region13: #{tpu_custom_call.1} parent=11 // pred_check
          %p310 = pneg %p101
        $region14: #{tpu_custom_call.1} parent=11 // pred_check_branch
          %312 = sbr.rel (%p310) target = $region16
        $region15: #{tpu_custom_call.1} parent=11 // pred_region
          %s314 = ssub.s32 16000, 16000
          %315 = vsyncadd [#allocation6], %s314
          %s316 = sshll.u32 [#allocation7], 4
          %s317 = int_to_ptr.vmem [resolvable:$true] %s316
          %322 = dma.hbm_to_vmem [thread:$0]  %s2, 16000, %s317, [#allocation6], 128, 128, 8
        $region16: #{tpu_custom_call.1} parent=11 // pred_fallthru
          _
        // Predicated region
        $region17: #{tpu_custom_call.1} parent=11 // pred_check
          %p323 = pneg %p122
        $region18: #{tpu_custom_call.1} parent=11 // pred_check_branch
          %325 = sbr.rel (%p323) target = $region20
        $region19: #{tpu_custom_call.1} parent=11 // pred_region
          _
        $region20: #{tpu_custom_call.1} parent=11 // pred_fallthru
          _
        // Predicated region
        $region21: #{tpu_custom_call.1} parent=11 // pred_check
          %p326 = pneg %p143
        $region22: #{tpu_custom_call.1} parent=11 // pred_check_branch
          %328 = sbr.rel (%p326) target = $region24
        $region23: #{tpu_custom_call.1} parent=11 // pred_region
          %s330 = ssub.s32 12800, 12800
          %331 = vsyncadd [#allocation9], %s330
          %s332 = sshll.u32 [#allocation8], 4
          %s333 = int_to_ptr.vmem [resolvable:$true] %s332
          %338 = dma.hbm_to_vmem [thread:$0]  %s4, 12800, %s333, [#allocation9], 128, 128, 8
        $region24: #{tpu_custom_call.1} parent=11 // pred_fallthru
          _
        // Predicated region
        $region25: #{tpu_custom_call.1} parent=11 // pred_check
          %p339 = pneg %p164
        $region26: #{tpu_custom_call.1} parent=11 // pred_check_branch
          %341 = sbr.rel (%p339) target = $region28
        $region27: #{tpu_custom_call.1} parent=11 // pred_region
          _
        $region28: #{tpu_custom_call.1} parent=11 // pred_fallthru
          _
        // Predicated region
        $region29: #{tpu_custom_call.1} parent=11 // pred_check
          %p342 = pneg %p185
        $region30: #{tpu_custom_call.1} parent=11 // pred_check_branch
          %344 = sbr.rel (%p342) target = $region32
        $region31: #{tpu_custom_call.1} parent=11 // pred_region
          %s346 = ssub.s32 2048, 2048
          %347 = vsyncadd [#allocation9], %s346
          %s348 = sshll.u32 [#allocation10], 4
          %s349 = int_to_ptr.vmem [resolvable:$true] %s348
          %354 = dma.hbm_to_vmem [thread:$0]  %s6, 2048, %s349, [#allocation9], 64, 64, 4
        $region32: #{tpu_custom_call.1} parent=11 // pred_fallthru
          _
        // Predicated region
        $region33: #{tpu_custom_call.1} parent=11 // pred_check
          %p355 = pneg %p206
        $region34: #{tpu_custom_call.1} parent=11 // pred_check_branch
          %357 = sbr.rel (%p355) target = $region36
        $region35: #{tpu_custom_call.1} parent=11 // pred_region
          %s359 = ssub.s32 2048, 2048
          %360 = vsyncadd [#allocation12], %s359
          %s361 = sshll.u32 [#allocation11], 4
          %s362 = int_to_ptr.vmem [resolvable:$true] %s361
          %367 = dma.hbm_to_vmem [thread:$0]  %s7, 2048, %s362, [#allocation12], 64, 64, 4
        $region36: #{tpu_custom_call.1} parent=11 // pred_fallthru
          _
        // Predicated region
        $region37: #{tpu_custom_call.1} parent=11 // pred_check
          %p368 = pneg %p227
        $region38: #{tpu_custom_call.1} parent=11 // pred_check_branch
          %370 = sbr.rel (%p368) target = $region40
        $region39: #{tpu_custom_call.1} parent=11 // pred_region
          _
        $region40: #{tpu_custom_call.1} parent=11 // pred_fallthru
          _
        // Predicated region
        $region41: #{tpu_custom_call.1} parent=11 // pred_check
          %p371 = pneg %p248
        $region42: #{tpu_custom_call.1} parent=11 // pred_check_branch
          %373 = sbr.rel (%p371) target = $region44
        $region43: #{tpu_custom_call.1} parent=11 // pred_region
          %s375 = ssub.s32 1024, 1024
          %376 = vsyncadd [#allocation12], %s375
          %s377 = sshll.u32 [#allocation13], 4
          %s378 = int_to_ptr.vmem [resolvable:$true] %s377
          %383 = dma.hbm_to_vmem [thread:$0]  %s9, 1024, %s378, [#allocation12], 64, 64, 4
        $region44: #{tpu_custom_call.1} parent=11 // pred_fallthru
          _
        // Predicated region
        $region45: #{tpu_custom_call.1} parent=11 // pred_check
          %p384 = pneg %p269
        $region46: #{tpu_custom_call.1} parent=11 // pred_check_branch
          %386 = sbr.rel (%p384) target = $region48
        $region47: #{tpu_custom_call.1} parent=11 // pred_region
          _
        $region48: #{tpu_custom_call.1} parent=11 // pred_fallthru
          _
      $region12: #{tpu_custom_call.1} parent=5 // pred_fallthru
        _
      %p387 = scmp.lt.s32.totalorder %s28, 2
      // Predicated region
      $region49: #{tpu_custom_call.1} parent=5 // pred_check
        %p388 = pneg %p387
      $region50: #{tpu_custom_call.1} parent=5 // pred_check_branch
        %390 = sbr.rel (%p388) target = $region52
      $region51: #{tpu_custom_call.1} parent=5 // pred_region
        // Predicated region
        $region53: #{tpu_custom_call.1} parent=51 // pred_check
          %p391 = pneg %p48
        $region54: #{tpu_custom_call.1} parent=51 // pred_check_branch
          %393 = sbr.rel (%p391) target = $region56
        $region55: #{tpu_custom_call.1} parent=51 // pred_region
          %s394 = sand.u32 %s38, 1
          %s395 = scalar_lea.sflag [#allocation3], %s394
          %s396 = sand.u32 %s38, 1
          %s397 = smul.addr %s396, 128
          %s398 = scalar_lea.vmem [#allocation2], %s397
          %s399 = smul.u32 2, %s28
          %s401 = ssub.s32 2048, 2048
          %402 = vsyncadd %s395, %s401
          %s403 = smul.addr %s399, 8
          %s404 = smul.addr %s403, 128
          %s405 = scalar_lea.hbm %s0, %s404
          %s406 = sshll.u32 %s398, 4
          %s407 = int_to_ptr.vmem [resolvable:$true] %s406
          %412 = dma.hbm_to_vmem [thread:$0]  %s405, 2048, %s407, %s395, 1024, 1024, 64
        $region56: #{tpu_custom_call.1} parent=51 // pred_fallthru
          _
        // Predicated region
        $region57: #{tpu_custom_call.1} parent=51 // pred_check
          %p413 = pneg %p74
        $region58: #{tpu_custom_call.1} parent=51 // pred_check_branch
          %415 = sbr.rel (%p413) target = $region60
        $region59: #{tpu_custom_call.1} parent=51 // pred_region
          %s416 = sand.u32 %s28, 1
          %s417 = scalar_lea.sflag [#allocation6], %s416
          %s418 = sand.u32 %s64, 1
          %s419 = smul.addr %s418, 112
          %s420 = scalar_lea.vmem [#allocation5], %s419
          %s421 = smul.u32 2, %s28
          %s423 = ssub.s32 1792, 1792
          %424 = vsyncadd %s417, %s423
          %s425 = smul.addr %s421, 7
          %s426 = smul.addr %s425, 128
          %s427 = scalar_lea.hbm %s1, %s426
          %s428 = sshll.u32 %s420, 4
          %s429 = int_to_ptr.vmem [resolvable:$true] %s428
          %434 = dma.hbm_to_vmem [thread:$0]  %s427, 1792, %s429, %s417, 896, 896, 56
        $region60: #{tpu_custom_call.1} parent=51 // pred_fallthru
          _
      $region52: #{tpu_custom_call.1} parent=5 // pred_fallthru
        _
      %p435 = scmp.le.s32.totalorder 1, %s28
      %p436 = scmp.lt.s32.totalorder %s28, 3
      %p437 = pnand %p435, %p436
      %p438 = pneg %p437
      // Predicated region
      $region61: #{tpu_custom_call.1} parent=5 // pred_check
        _
      $region62: #{tpu_custom_call.1} parent=5 // pred_check_branch
        %440 = sbr.rel (%p437) target = $region64
      $region63: #{tpu_custom_call.1} parent=5 // pred_region
        %s441 = ssub.s32 %s28, 1
        %s442 = sand.u32 %s41, 1
        %s443 = scalar_lea.sflag [#allocation3], %s442
        %s444 = sand.u32 %s41, 1
        %s445 = smul.addr %s444, 128
        %s446 = scalar_lea.vmem [#allocation2], %s445
        // Predicated region
        $region65: #{tpu_custom_call.1} parent=63 // pred_check
          %p447 = pneg %p54
        $region66: #{tpu_custom_call.1} parent=63 // pred_check_branch
          %449 = sbr.rel (%p447) target = $region68
        $region67: #{tpu_custom_call.1} parent=63 // pred_region
          %450 = dma.done %s443, 2048
        $region68: #{tpu_custom_call.1} parent=63 // pred_fallthru
          _
        %s451 = sand.u32 %s33, 1
        %s452 = scalar_lea.sflag [#allocation6], %s451
        %s453 = sand.u32 %s67, 1
        %s454 = smul.addr %s453, 112
        %s455 = scalar_lea.vmem [#allocation5], %s454
        // Predicated region
        $region69: #{tpu_custom_call.1} parent=63 // pred_check
          %p456 = pneg %p80
        $region70: #{tpu_custom_call.1} parent=63 // pred_check_branch
          %458 = sbr.rel (%p456) target = $region72
        $region71: #{tpu_custom_call.1} parent=63 // pred_region
          %459 = dma.done %s452, 1792
        $region72: #{tpu_custom_call.1} parent=63 // pred_fallthru
          _
        // Predicated region
        $region73: #{tpu_custom_call.1} parent=63 // pred_check
          %p460 = pneg %p101
        $region74: #{tpu_custom_call.1} parent=63 // pred_check_branch
          %462 = sbr.rel (%p460) target = $region76
        $region75: #{tpu_custom_call.1} parent=63 // pred_region
          %463 = dma.done [#allocation6], 16000
        $region76: #{tpu_custom_call.1} parent=63 // pred_fallthru
          _
        // Predicated region
        $region77: #{tpu_custom_call.1} parent=63 // pred_check
          %p464 = pneg %p143
        $region78: #{tpu_custom_call.1} parent=63 // pred_check_branch
          %466 = sbr.rel (%p464) target = $region80
        $region79: #{tpu_custom_call.1} parent=63 // pred_region
          %467 = dma.done [#allocation9], 12800
        $region80: #{tpu_custom_call.1} parent=63 // pred_fallthru
          _
        // Predicated region
        $region81: #{tpu_custom_call.1} parent=63 // pred_check
          %p468 = pneg %p185
        $region82: #{tpu_custom_call.1} parent=63 // pred_check_branch
          %470 = sbr.rel (%p468) target = $region84
        $region83: #{tpu_custom_call.1} parent=63 // pred_region
          %471 = dma.done [#allocation9], 2048
        $region84: #{tpu_custom_call.1} parent=63 // pred_fallthru
          _
        // Predicated region
        $region85: #{tpu_custom_call.1} parent=63 // pred_check
          %p472 = pneg %p206
        $region86: #{tpu_custom_call.1} parent=63 // pred_check_branch
          %474 = sbr.rel (%p472) target = $region88
        $region87: #{tpu_custom_call.1} parent=63 // pred_region
          %475 = dma.done [#allocation12], 2048
        $region88: #{tpu_custom_call.1} parent=63 // pred_fallthru
          _
        // Predicated region
        $region89: #{tpu_custom_call.1} parent=63 // pred_check
          %p476 = pneg %p248
        $region90: #{tpu_custom_call.1} parent=63 // pred_check_branch
          %478 = sbr.rel (%p476) target = $region92
        $region91: #{tpu_custom_call.1} parent=63 // pred_region
          %479 = dma.done [#allocation12], 1024
        $region92: #{tpu_custom_call.1} parent=63 // pred_fallthru
          _
        %s480 = sand.u32 %s41, 1
        %s481 = scalar_lea.sflag [#allocation3], %s480
        %s482 = sand.u32 %s41, 1
        %s483 = smul.addr %s482, 128
        %s484 = scalar_lea.vmem [#allocation2], %s483
        %p485 = pneg %p54
        %p486 = pneg %p51
        %s487 = sand.u32 %s33, 1
        %s488 = scalar_lea.sflag [#allocation6], %s487
        %s489 = sand.u32 %s67, 1
        %s490 = smul.addr %s489, 112
        %s491 = scalar_lea.vmem [#allocation5], %s490
        %p492 = pneg %p80
        %p493 = pneg %p77
        %p494 = pneg %p101
        %p495 = pneg %p98
        %p496 = pneg %p122
        %p497 = pneg %p119
        %p498 = pneg %p143
        %p499 = pneg %p140
        %p500 = pneg %p164
        %p501 = pneg %p161
        %p502 = pneg %p185
        %p503 = pneg %p182
        %p504 = pneg %p206
        %p505 = pneg %p203
        %p506 = pneg %p227
        %p507 = pneg %p224
        %p508 = pneg %p248
        %p509 = pneg %p245
        %p510 = pneg %p269
        %p511 = pneg %p266
        %p512 = pneg %p295
        %p513 = pneg %p292
        %s514 = sand.u32 %s282, 1
        %s515 = scalar_lea.sflag [#allocation4], %s514
        %s516 = sand.u32 %s282, 1
        %s517 = smul.addr %s516, 16
        %s518 = scalar_lea.vmem [#allocation14], %s517
        %s519 = smul.u32 2, %s33
        %s520 = smul.u32 2, %s33
        %s521 = smul.u32 2, %s33
        %v523 = vld [vmem:[%s446] sm:$0xff]
        %v524 = vld [vmem:[%s446 + $0x8] sm:$0xff]
        %v525 = vld [vmem:[%s446 + $0x10] sm:$0xff]
        %v526 = vld [vmem:[%s446 + $0x18] sm:$0xff]
        %v527 = vld [vmem:[%s446 + $0x20] sm:$0xff]
        %v528 = vld [vmem:[%s446 + $0x28] sm:$0xff]
        %v529 = vld [vmem:[%s446 + $0x30] sm:$0xff]
        %v530 = vld [vmem:[%s446 + $0x38] sm:$0xff]
        %v531 = vld [vmem:[%s446 + $0x40] sm:$0xff]
        %v532 = vld [vmem:[%s446 + $0x48] sm:$0xff]
        %v533 = vld [vmem:[%s446 + $0x50] sm:$0xff]
        %v534 = vld [vmem:[%s446 + $0x58] sm:$0xff]
        %v535 = vld [vmem:[%s446 + $0x60] sm:$0xff]
        %v536 = vld [vmem:[%s446 + $0x68] sm:$0xff]
        %v537 = vld [vmem:[%s446 + $0x70] sm:$0xff]
        %v538 = vld [vmem:[%s446 + $0x78] sm:$0xff]
        %v539 = vpack.c.bf16 %v531, %v523
        %v540 = vpack.c.bf16 %v532, %v524
        %v541 = vpack.c.bf16 %v533, %v525
        %v542 = vpack.c.bf16 %v534, %v526
        %v543 = vpack.c.bf16 %v535, %v527
        %v544 = vpack.c.bf16 %v536, %v528
        %v545 = vpack.c.bf16 %v537, %v529
        %v546 = vpack.c.bf16 %v538, %v530
        %v547 = vld [vmem:[#allocation7] sm:$0xff]
        %v548 = vld [vmem:[#allocation7 + $0x8] sm:$0xff]
        %v549 = vld [vmem:[#allocation7 + $0x10] sm:$0xff]
        %v550 = vld [vmem:[#allocation7 + $0x18] sm:$0xff]
        %v551 = vld [vmem:[#allocation7 + $0x20] sm:$0xff]
        %v552 = vld [vmem:[#allocation7 + $0x28] sm:$0xff]
        %v553 = vld [vmem:[#allocation7 + $0x30] sm:$0xff]
        %v554 = vld [vmem:[#allocation7 + $0x38] sm:$0xff]
        %v555 = vld [vmem:[#allocation7 + $0x40] sm:$0xff]
        %v556 = vld [vmem:[#allocation7 + $0x48] sm:$0xff]
        %v557 = vld [vmem:[#allocation7 + $0x50] sm:$0xff]
        %v558 = vld [vmem:[#allocation7 + $0x58] sm:$0xff]
        %v559 = vld [vmem:[#allocation7 + $0x60] sm:$0xff]
        %v560 = vld [vmem:[#allocation7 + $0x68] sm:$0xff]
        %v561 = vld [vmem:[#allocation7 + $0x70] sm:$0xff]
        %v562 = vld [vmem:[#allocation7 + $0x78] sm:$0xff]
        %v563 = vld [vmem:[#allocation7 + $0x80] sm:$0xff]
        %v564 = vld [vmem:[#allocation7 + $0x88] sm:$0xff]
        %v565 = vld [vmem:[#allocation7 + $0x90] sm:$0xff]
        %v566 = vld [vmem:[#allocation7 + $0x98] sm:$0xff]
        %v567 = vld [vmem:[#allocation7 + $0xa0] sm:$0xff]
        %v568 = vld [vmem:[#allocation7 + $0xa8] sm:$0xff]
        %v569 = vld [vmem:[#allocation7 + $0xb0] sm:$0xff]
        %v570 = vld [vmem:[#allocation7 + $0xb8] sm:$0xff]
        %v571 = vld [vmem:[#allocation7 + $0xc0] sm:$0xff]
        %v572 = vld [vmem:[#allocation7 + $0xc8] sm:$0xff]
        %v573 = vld [vmem:[#allocation7 + $0xd0] sm:$0xff]
        %v574 = vld [vmem:[#allocation7 + $0xd8] sm:$0xff]
        %v575 = vld [vmem:[#allocation7 + $0xe0] sm:$0xff]
        %v576 = vld [vmem:[#allocation7 + $0xe8] sm:$0xff]
        %v577 = vld [vmem:[#allocation7 + $0xf0] sm:$0xff]
        %v578 = vld [vmem:[#allocation7 + $0xf8] sm:$0xff]
        %v579 = vld [vmem:[#allocation7 + $0x100] sm:$0xff]
        %v580 = vld [vmem:[#allocation7 + $0x108] sm:$0xff]
        %v581 = vld [vmem:[#allocation7 + $0x110] sm:$0xff]
        %v582 = vld [vmem:[#allocation7 + $0x118] sm:$0xff]
        %v583 = vld [vmem:[#allocation7 + $0x120] sm:$0xff]
        %v584 = vld [vmem:[#allocation7 + $0x128] sm:$0xff]
        %v585 = vld [vmem:[#allocation7 + $0x130] sm:$0xff]
        %v586 = vld [vmem:[#allocation7 + $0x138] sm:$0xff]
        %v587 = vld [vmem:[#allocation7 + $0x140] sm:$0xff]
        %v588 = vld [vmem:[#allocation7 + $0x148] sm:$0xff]
        %v589 = vld [vmem:[#allocation7 + $0x150] sm:$0xff]
        %v590 = vld [vmem:[#allocation7 + $0x158] sm:$0xff]
        %v591 = vld [vmem:[#allocation7 + $0x160] sm:$0xff]
        %v592 = vld [vmem:[#allocation7 + $0x168] sm:$0xff]
        %v593 = vld [vmem:[#allocation7 + $0x170] sm:$0xff]
        %v594 = vld [vmem:[#allocation7 + $0x178] sm:$0xff]
        %v595 = vld [vmem:[#allocation7 + $0x180] sm:$0xff]
        %v596 = vld [vmem:[#allocation7 + $0x188] sm:$0xff]
        %v597 = vld [vmem:[#allocation7 + $0x190] sm:$0xff]
        %v598 = vld [vmem:[#allocation7 + $0x198] sm:$0xff]
        %v599 = vld [vmem:[#allocation7 + $0x1a0] sm:$0xff]
        %v600 = vld [vmem:[#allocation7 + $0x1a8] sm:$0xff]
        %v601 = vld [vmem:[#allocation7 + $0x1b0] sm:$0xff]
        %v602 = vld [vmem:[#allocation7 + $0x1b8] sm:$0xff]
        %v603 = vld [vmem:[#allocation7 + $0x1c0] sm:$0xff]
        %v604 = vld [vmem:[#allocation7 + $0x1c8] sm:$0xff]
        %v605 = vld [vmem:[#allocation7 + $0x1d0] sm:$0xff]
        %v606 = vld [vmem:[#allocation7 + $0x1d8] sm:$0xff]
        %v607 = vld [vmem:[#allocation7 + $0x1e0] sm:$0xff]
        %v608 = vld [vmem:[#allocation7 + $0x1e8] sm:$0xff]
        %v609 = vld [vmem:[#allocation7 + $0x1f0] sm:$0xff]
        %v610 = vld [vmem:[#allocation7 + $0x1f8] sm:$0xff]
        %v611 = vld [vmem:[#allocation7 + $0x200] sm:$0xff]
        %v612 = vld [vmem:[#allocation7 + $0x208] sm:$0xff]
        %v613 = vld [vmem:[#allocation7 + $0x210] sm:$0xff]
        %v614 = vld [vmem:[#allocation7 + $0x218] sm:$0xff]
        %v615 = vld [vmem:[#allocation7 + $0x220] sm:$0xff]
        %v616 = vld [vmem:[#allocation7 + $0x228] sm:$0xff]
        %v617 = vld [vmem:[#allocation7 + $0x230] sm:$0xff]
        %v618 = vld [vmem:[#allocation7 + $0x238] sm:$0xff]
        %v619 = vld [vmem:[#allocation7 + $0x240] sm:$0xff]
        %v620 = vld [vmem:[#allocation7 + $0x248] sm:$0xff]
        %v621 = vld [vmem:[#allocation7 + $0x250] sm:$0xff]
        %v622 = vld [vmem:[#allocation7 + $0x258] sm:$0xff]
        %v623 = vld [vmem:[#allocation7 + $0x260] sm:$0xff]
        %v624 = vld [vmem:[#allocation7 + $0x268] sm:$0xff]
        %v625 = vld [vmem:[#allocation7 + $0x270] sm:$0xff]
        %v626 = vld [vmem:[#allocation7 + $0x278] sm:$0xff]
        %v627 = vld [vmem:[#allocation7 + $0x280] sm:$0xff]
        %v628 = vld [vmem:[#allocation7 + $0x288] sm:$0xff]
        %v629 = vld [vmem:[#allocation7 + $0x290] sm:$0xff]
        %v630 = vld [vmem:[#allocation7 + $0x298] sm:$0xff]
        %v631 = vld [vmem:[#allocation7 + $0x2a0] sm:$0xff]
        %v632 = vld [vmem:[#allocation7 + $0x2a8] sm:$0xff]
        %v633 = vld [vmem:[#allocation7 + $0x2b0] sm:$0xff]
        %v634 = vld [vmem:[#allocation7 + $0x2b8] sm:$0xff]
        %v635 = vld [vmem:[#allocation7 + $0x2c0] sm:$0xff]
        %v636 = vld [vmem:[#allocation7 + $0x2c8] sm:$0xff]
        %v637 = vld [vmem:[#allocation7 + $0x2d0] sm:$0xff]
        %v638 = vld [vmem:[#allocation7 + $0x2d8] sm:$0xff]
        %v639 = vld [vmem:[#allocation7 + $0x2e0] sm:$0xff]
        %v640 = vld [vmem:[#allocation7 + $0x2e8] sm:$0xff]
        %v641 = vld [vmem:[#allocation7 + $0x2f0] sm:$0xff]
        %v642 = vld [vmem:[#allocation7 + $0x2f8] sm:$0xff]
        %v643 = vld [vmem:[#allocation7 + $0x300] sm:$0xff]
        %v644 = vld [vmem:[#allocation7 + $0x308] sm:$0xff]
        %v645 = vld [vmem:[#allocation7 + $0x310] sm:$0xff]
        %v646 = vld [vmem:[#allocation7 + $0x318] sm:$0xff]
        %v647 = vld [vmem:[#allocation7 + $0x320] sm:$0xff]
        %v648 = vld [vmem:[#allocation7 + $0x328] sm:$0xff]
        %v649 = vld [vmem:[#allocation7 + $0x330] sm:$0xff]
        %v650 = vld [vmem:[#allocation7 + $0x338] sm:$0xff]
        %v651 = vld [vmem:[#allocation7 + $0x340] sm:$0xff]
        %v652 = vld [vmem:[#allocation7 + $0x348] sm:$0xff]
        %v653 = vld [vmem:[#allocation7 + $0x350] sm:$0xff]
        %v654 = vld [vmem:[#allocation7 + $0x358] sm:$0xff]
        %v655 = vld [vmem:[#allocation7 + $0x360] sm:$0xff]
        %v656 = vld [vmem:[#allocation7 + $0x368] sm:$0xff]
        %v657 = vld [vmem:[#allocation7 + $0x370] sm:$0xff]
        %v658 = vld [vmem:[#allocation7 + $0x378] sm:$0xff]
        %v659 = vld [vmem:[#allocation7 + $0x380] sm:$0xff]
        %v660 = vld [vmem:[#allocation7 + $0x388] sm:$0xff]
        %v661 = vld [vmem:[#allocation7 + $0x390] sm:$0xff]
        %v662 = vld [vmem:[#allocation7 + $0x398] sm:$0xff]
        %v663 = vld [vmem:[#allocation7 + $0x3a0] sm:$0xff]
        %v664 = vld [vmem:[#allocation7 + $0x3a8] sm:$0xff]
        %v665 = vld [vmem:[#allocation7 + $0x3b0] sm:$0xff]
        %v666 = vld [vmem:[#allocation7 + $0x3b8] sm:$0xff]
        %v667 = vld [vmem:[#allocation7 + $0x3c0] sm:$0xff]
        %v668 = vld [vmem:[#allocation7 + $0x3c8] sm:$0xff]
        %v669 = vld [vmem:[#allocation7 + $0x3d0] sm:$0xff]
        %v670 = vld [vmem:[#allocation7 + $0x3d8] sm:$0xff]
        %v671 = vld [vmem:[#allocation7 + $0x3e0] sm:$0xff]
        %v672 = vld [vmem:[%s3] sm:$0x3]
        %v674 = vlaneseq
        %v675 = vshrl.u32 %v674, 7
        %v676 = vsub.s32 0, %v675
        %v677 = vrot.slane %v672, %v676
        %v678 = vlaneseq
        %v679 = vshrl.u32 %v678, 7
        %v680 = vsub.s32 1, %v679
        %v681 = vrot.slane %v672, %v680
        %v809 = vunpack.c.l.b16 %v547
        %v810 = vunpack.c.h.b16 %v547
        %v811 = vunpack.c.l.b16 %v548
        %v812 = vunpack.c.h.b16 %v548
        %v813 = vunpack.c.l.b16 %v549
        %v814 = vunpack.c.h.b16 %v549
        %v815 = vunpack.c.l.b16 %v550
        %v816 = vunpack.c.h.b16 %v550
        %v817 = vunpack.c.l.b16 %v551
        %v818 = vunpack.c.h.b16 %v551
        %v819 = vunpack.c.l.b16 %v552
        %v820 = vunpack.c.h.b16 %v552
        %v821 = vunpack.c.l.b16 %v553
        %v822 = vunpack.c.h.b16 %v553
        %v823 = vunpack.c.l.b16 %v554
        %v824 = vunpack.c.h.b16 %v554
        %v825 = vunpack.c.l.b16 %v555
        %v826 = vunpack.c.h.b16 %v555
        %v827 = vunpack.c.l.b16 %v556
        %v828 = vunpack.c.h.b16 %v556
        %v829 = vunpack.c.l.b16 %v557
        %v830 = vunpack.c.h.b16 %v557
        %v831 = vunpack.c.l.b16 %v558
        %v832 = vunpack.c.h.b16 %v558
        %v833 = vunpack.c.l.b16 %v559
        %v834 = vunpack.c.h.b16 %v559
        %v835 = vunpack.c.l.b16 %v560
        %v836 = vunpack.c.h.b16 %v560
        %v837 = vunpack.c.l.b16 %v561
        %v838 = vunpack.c.h.b16 %v561
        %v839 = vunpack.c.l.b16 %v562
        %v840 = vunpack.c.h.b16 %v562
        %v841 = vunpack.c.l.b16 %v563
        %v842 = vunpack.c.h.b16 %v563
        %v843 = vunpack.c.l.b16 %v564
        %v844 = vunpack.c.h.b16 %v564
        %v845 = vunpack.c.l.b16 %v565
        %v846 = vunpack.c.h.b16 %v565
        %v847 = vunpack.c.l.b16 %v566
        %v848 = vunpack.c.h.b16 %v566
        %v849 = vunpack.c.l.b16 %v567
        %v850 = vunpack.c.h.b16 %v567
        %v851 = vunpack.c.l.b16 %v568
        %v852 = vunpack.c.h.b16 %v568
        %v853 = vunpack.c.l.b16 %v569
        %v854 = vunpack.c.h.b16 %v569
        %v855 = vunpack.c.l.b16 %v570
        %v856 = vunpack.c.h.b16 %v570
        %v857 = vunpack.c.l.b16 %v571
        %v858 = vunpack.c.h.b16 %v571
        %v859 = vunpack.c.l.b16 %v572
        %v860 = vunpack.c.h.b16 %v572
        %v861 = vunpack.c.l.b16 %v573
        %v862 = vunpack.c.h.b16 %v573
        %v863 = vunpack.c.l.b16 %v574
        %v864 = vunpack.c.h.b16 %v574
        %v865 = vunpack.c.l.b16 %v575
        %v866 = vunpack.c.h.b16 %v575
        %v867 = vunpack.c.l.b16 %v576
        %v868 = vunpack.c.h.b16 %v576
        %v869 = vunpack.c.l.b16 %v577
        %v870 = vunpack.c.h.b16 %v577
        %v871 = vunpack.c.l.b16 %v578
        %v872 = vunpack.c.h.b16 %v578
        %v873 = vunpack.c.l.b16 %v579
        %v874 = vunpack.c.h.b16 %v579
        %v875 = vunpack.c.l.b16 %v580
        %v876 = vunpack.c.h.b16 %v580
        %v877 = vunpack.c.l.b16 %v581
        %v878 = vunpack.c.h.b16 %v581
        %v879 = vunpack.c.l.b16 %v582
        %v880 = vunpack.c.h.b16 %v582
        %v881 = vunpack.c.l.b16 %v583
        %v882 = vunpack.c.h.b16 %v583
        %v883 = vunpack.c.l.b16 %v584
        %v884 = vunpack.c.h.b16 %v584
        %v885 = vunpack.c.l.b16 %v585
        %v886 = vunpack.c.h.b16 %v585
        %v887 = vunpack.c.l.b16 %v586
        %v888 = vunpack.c.h.b16 %v586
        %v889 = vunpack.c.l.b16 %v587
        %v890 = vunpack.c.h.b16 %v587
        %v891 = vunpack.c.l.b16 %v588
        %v892 = vunpack.c.h.b16 %v588
        %v893 = vunpack.c.l.b16 %v589
        %v894 = vunpack.c.h.b16 %v589
        %v895 = vunpack.c.l.b16 %v590
        %v896 = vunpack.c.h.b16 %v590
        %v897 = vunpack.c.l.b16 %v591
        %v898 = vunpack.c.h.b16 %v591
        %v899 = vunpack.c.l.b16 %v592
        %v900 = vunpack.c.h.b16 %v592
        %v901 = vunpack.c.l.b16 %v593
        %v902 = vunpack.c.h.b16 %v593
        %v903 = vunpack.c.l.b16 %v594
        %v904 = vunpack.c.h.b16 %v594
        %v905 = vunpack.c.l.b16 %v595
        %v906 = vunpack.c.h.b16 %v595
        %v907 = vunpack.c.l.b16 %v596
        %v908 = vunpack.c.h.b16 %v596
        %v909 = vunpack.c.l.b16 %v597
        %v910 = vunpack.c.h.b16 %v597
        %v911 = vunpack.c.l.b16 %v598
        %v912 = vunpack.c.h.b16 %v598
        %v913 = vunpack.c.l.b16 %v599
        %v914 = vunpack.c.h.b16 %v599
        %v915 = vunpack.c.l.b16 %v600
        %v916 = vunpack.c.h.b16 %v600
        %v917 = vunpack.c.l.b16 %v601
        %v918 = vunpack.c.h.b16 %v601
        %v919 = vunpack.c.l.b16 %v602
        %v920 = vunpack.c.h.b16 %v602
        %v921 = vunpack.c.l.b16 %v603
        %v922 = vunpack.c.h.b16 %v603
        %v923 = vunpack.c.l.b16 %v604
        %v924 = vunpack.c.h.b16 %v604
        %v925 = vunpack.c.l.b16 %v605
        %v926 = vunpack.c.h.b16 %v605
        %v927 = vunpack.c.l.b16 %v606
        %v928 = vunpack.c.h.b16 %v606
        %v929 = vunpack.c.l.b16 %v607
        %v930 = vunpack.c.h.b16 %v607
        %v931 = vunpack.c.l.b16 %v608
        %v932 = vunpack.c.h.b16 %v608
        %v933 = vunpack.c.l.b16 %v609
        %v934 = vunpack.c.h.b16 %v609
        %v935 = vunpack.c.l.b16 %v610
        %v936 = vunpack.c.h.b16 %v610
        %v937 = vunpack.c.l.b16 %v611
        %v938 = vunpack.c.h.b16 %v611
        %v939 = vunpack.c.l.b16 %v612
        %v940 = vunpack.c.h.b16 %v612
        %v941 = vunpack.c.l.b16 %v613
        %v942 = vunpack.c.h.b16 %v613
        %v943 = vunpack.c.l.b16 %v614
        %v944 = vunpack.c.h.b16 %v614
        %v945 = vunpack.c.l.b16 %v615
        %v946 = vunpack.c.h.b16 %v615
        %v947 = vunpack.c.l.b16 %v616
        %v948 = vunpack.c.h.b16 %v616
        %v949 = vunpack.c.l.b16 %v617
        %v950 = vunpack.c.h.b16 %v617
        %v951 = vunpack.c.l.b16 %v618
        %v952 = vunpack.c.h.b16 %v618
        %v953 = vunpack.c.l.b16 %v619
        %v954 = vunpack.c.h.b16 %v619
        %v955 = vunpack.c.l.b16 %v620
        %v956 = vunpack.c.h.b16 %v620
        %v957 = vunpack.c.l.b16 %v621
        %v958 = vunpack.c.h.b16 %v621
        %v959 = vunpack.c.l.b16 %v622
        %v960 = vunpack.c.h.b16 %v622
        %v961 = vunpack.c.l.b16 %v623
        %v962 = vunpack.c.h.b16 %v623
        %v963 = vunpack.c.l.b16 %v624
        %v964 = vunpack.c.h.b16 %v624
        %v965 = vunpack.c.l.b16 %v625
        %v966 = vunpack.c.h.b16 %v625
        %v967 = vunpack.c.l.b16 %v626
        %v968 = vunpack.c.h.b16 %v626
        %v969 = vunpack.c.l.b16 %v627
        %v970 = vunpack.c.h.b16 %v627
        %v971 = vunpack.c.l.b16 %v628
        %v972 = vunpack.c.h.b16 %v628
        %v973 = vunpack.c.l.b16 %v629
        %v974 = vunpack.c.h.b16 %v629
        %v975 = vunpack.c.l.b16 %v630
        %v976 = vunpack.c.h.b16 %v630
        %v977 = vunpack.c.l.b16 %v631
        %v978 = vunpack.c.h.b16 %v631
        %v979 = vunpack.c.l.b16 %v632
        %v980 = vunpack.c.h.b16 %v632
        %v981 = vunpack.c.l.b16 %v633
        %v982 = vunpack.c.h.b16 %v633
        %v983 = vunpack.c.l.b16 %v634
        %v984 = vunpack.c.h.b16 %v634
        %v985 = vunpack.c.l.b16 %v635
        %v986 = vunpack.c.h.b16 %v635
        %v987 = vunpack.c.l.b16 %v636
        %v988 = vunpack.c.h.b16 %v636
        %v989 = vunpack.c.l.b16 %v637
        %v990 = vunpack.c.h.b16 %v637
        %v991 = vunpack.c.l.b16 %v638
        %v992 = vunpack.c.h.b16 %v638
        %v993 = vunpack.c.l.b16 %v639
        %v994 = vunpack.c.h.b16 %v639
        %v995 = vunpack.c.l.b16 %v640
        %v996 = vunpack.c.h.b16 %v640
        %v997 = vunpack.c.l.b16 %v641
        %v998 = vunpack.c.h.b16 %v641
        %v999 = vunpack.c.l.b16 %v642
        %v1000 = vunpack.c.h.b16 %v642
        %v1001 = vunpack.c.l.b16 %v643
        %v1002 = vunpack.c.h.b16 %v643
        %v1003 = vunpack.c.l.b16 %v644
        %v1004 = vunpack.c.h.b16 %v644
        %v1005 = vunpack.c.l.b16 %v645
        %v1006 = vunpack.c.h.b16 %v645
        %v1007 = vunpack.c.l.b16 %v646
        %v1008 = vunpack.c.h.b16 %v646
        %v1009 = vunpack.c.l.b16 %v647
        %v1010 = vunpack.c.h.b16 %v647
        %v1011 = vunpack.c.l.b16 %v648
        %v1012 = vunpack.c.h.b16 %v648
        %v1013 = vunpack.c.l.b16 %v649
        %v1014 = vunpack.c.h.b16 %v649
        %v1015 = vunpack.c.l.b16 %v650
        %v1016 = vunpack.c.h.b16 %v650
        %v1017 = vunpack.c.l.b16 %v651
        %v1018 = vunpack.c.h.b16 %v651
        %v1019 = vunpack.c.l.b16 %v652
        %v1020 = vunpack.c.h.b16 %v652
        %v1021 = vunpack.c.l.b16 %v653
        %v1022 = vunpack.c.h.b16 %v653
        %v1023 = vunpack.c.l.b16 %v654
        %v1024 = vunpack.c.h.b16 %v654
        %v1025 = vunpack.c.l.b16 %v655
        %v1026 = vunpack.c.h.b16 %v655
        %v1027 = vunpack.c.l.b16 %v656
        %v1028 = vunpack.c.h.b16 %v656
        %v1029 = vunpack.c.l.b16 %v657
        %v1030 = vunpack.c.h.b16 %v657
        %v1031 = vunpack.c.l.b16 %v658
        %v1032 = vunpack.c.h.b16 %v658
        %v1033 = vunpack.c.l.b16 %v659
        %v1034 = vunpack.c.h.b16 %v659
        %v1035 = vunpack.c.l.b16 %v660
        %v1036 = vunpack.c.h.b16 %v660
        %v1037 = vunpack.c.l.b16 %v661
        %v1038 = vunpack.c.h.b16 %v661
        %v1039 = vunpack.c.l.b16 %v662
        %v1040 = vunpack.c.h.b16 %v662
        %v1041 = vunpack.c.l.b16 %v663
        %v1042 = vunpack.c.h.b16 %v663
        %v1043 = vunpack.c.l.b16 %v664
        %v1044 = vunpack.c.h.b16 %v664
        %v1045 = vunpack.c.l.b16 %v665
        %v1046 = vunpack.c.h.b16 %v665
        %v1047 = vunpack.c.l.b16 %v666
        %v1048 = vunpack.c.h.b16 %v666
        %v1049 = vunpack.c.l.b16 %v667
        %v1050 = vunpack.c.h.b16 %v667
        %v1051 = vunpack.c.l.b16 %v668
        %v1052 = vunpack.c.h.b16 %v668
        %v1053 = vunpack.c.l.b16 %v669
        %v1054 = vunpack.c.h.b16 %v669
        %v1055 = vunpack.c.l.b16 %v670
        %v1056 = vunpack.c.h.b16 %v670
        %v1057 = vunpack.c.l.b16 %v671
        %v1058 = vunpack.c.h.b16 %v671
        %v1059 = vpack.c.b16 %v811, %v809
        %v1060 = vpack.c.b16 %v812, %v810
        %v1061 = vpack.c.b16 %v815, %v813
        %v1062 = vpack.c.b16 %v816, %v814
        %v1063 = vpack.c.b16 %v819, %v817
        %v1064 = vpack.c.b16 %v820, %v818
        %v1065 = vpack.c.b16 %v823, %v821
        %v1066 = vpack.c.b16 %v824, %v822
        %v1067 = vpack.c.b16 %v827, %v825
        %v1068 = vpack.c.b16 %v828, %v826
        %v1069 = vpack.c.b16 %v831, %v829
        %v1070 = vpack.c.b16 %v832, %v830
        %v1071 = vpack.c.b16 %v835, %v833
        %v1072 = vpack.c.b16 %v836, %v834
        %v1073 = vpack.c.b16 %v839, %v837
        %v1074 = vpack.c.b16 %v840, %v838
        %v1075 = vpack.c.b16 %v843, %v841
        %v1076 = vpack.c.b16 %v844, %v842
        %v1077 = vpack.c.b16 %v847, %v845
        %v1078 = vpack.c.b16 %v848, %v846
        %v1079 = vpack.c.b16 %v851, %v849
        %v1080 = vpack.c.b16 %v852, %v850
        %v1081 = vpack.c.b16 %v855, %v853
        %v1082 = vpack.c.b16 %v856, %v854
        %v1083 = vpack.c.b16 %v859, %v857
        %v1084 = vpack.c.b16 %v860, %v858
        %v1085 = vpack.c.b16 %v863, %v861
        %v1086 = vpack.c.b16 %v864, %v862
        %v1087 = vpack.c.b16 %v867, %v865
        %v1088 = vpack.c.b16 %v868, %v866
        %v1089 = vpack.c.b16 %v871, %v869
        %v1090 = vpack.c.b16 %v872, %v870
        %v1091 = vpack.c.b16 %v875, %v873
        %v1092 = vpack.c.b16 %v876, %v874
        %v1093 = vpack.c.b16 %v879, %v877
        %v1094 = vpack.c.b16 %v880, %v878
        %v1095 = vpack.c.b16 %v883, %v881
        %v1096 = vpack.c.b16 %v884, %v882
        %v1097 = vpack.c.b16 %v887, %v885
        %v1098 = vpack.c.b16 %v888, %v886
        %v1099 = vpack.c.b16 %v891, %v889
        %v1100 = vpack.c.b16 %v892, %v890
        %v1101 = vpack.c.b16 %v895, %v893
        %v1102 = vpack.c.b16 %v896, %v894
        %v1103 = vpack.c.b16 %v899, %v897
        %v1104 = vpack.c.b16 %v900, %v898
        %v1105 = vpack.c.b16 %v903, %v901
        %v1106 = vpack.c.b16 %v904, %v902
        %v1107 = vpack.c.b16 %v907, %v905
        %v1108 = vpack.c.b16 %v908, %v906
        %v1109 = vpack.c.b16 %v911, %v909
        %v1110 = vpack.c.b16 %v912, %v910
        %v1111 = vpack.c.b16 %v915, %v913
        %v1112 = vpack.c.b16 %v916, %v914
        %v1113 = vpack.c.b16 %v919, %v917
        %v1114 = vpack.c.b16 %v920, %v918
        %v1115 = vpack.c.b16 %v923, %v921
        %v1116 = vpack.c.b16 %v924, %v922
        %v1117 = vpack.c.b16 %v927, %v925
        %v1118 = vpack.c.b16 %v928, %v926
        %v1119 = vpack.c.b16 %v931, %v929
        %v1120 = vpack.c.b16 %v932, %v930
        %v1121 = vpack.c.b16 %v935, %v933
        %v1122 = vpack.c.b16 %v936, %v934
        %v1123 = vpack.c.b16 %v939, %v937
        %v1124 = vpack.c.b16 %v940, %v938
        %v1125 = vpack.c.b16 %v943, %v941
        %v1126 = vpack.c.b16 %v944, %v942
        %v1127 = vpack.c.b16 %v947, %v945
        %v1128 = vpack.c.b16 %v948, %v946
        %v1129 = vpack.c.b16 %v951, %v949
        %v1130 = vpack.c.b16 %v952, %v950
        %v1131 = vpack.c.b16 %v955, %v953
        %v1132 = vpack.c.b16 %v956, %v954
        %v1133 = vpack.c.b16 %v959, %v957
        %v1134 = vpack.c.b16 %v960, %v958
        %v1135 = vpack.c.b16 %v963, %v961
        %v1136 = vpack.c.b16 %v964, %v962
        %v1137 = vpack.c.b16 %v967, %v965
        %v1138 = vpack.c.b16 %v968, %v966
        %v1139 = vpack.c.b16 %v971, %v969
        %v1140 = vpack.c.b16 %v972, %v970
        %v1141 = vpack.c.b16 %v975, %v973
        %v1142 = vpack.c.b16 %v976, %v974
        %v1143 = vpack.c.b16 %v979, %v977
        %v1144 = vpack.c.b16 %v980, %v978
        %v1145 = vpack.c.b16 %v983, %v981
        %v1146 = vpack.c.b16 %v984, %v982
        %v1147 = vpack.c.b16 %v987, %v985
        %v1148 = vpack.c.b16 %v988, %v986
        %v1149 = vpack.c.b16 %v991, %v989
        %v1150 = vpack.c.b16 %v992, %v990
        %v1151 = vpack.c.b16 %v995, %v993
        %v1152 = vpack.c.b16 %v996, %v994
        %v1153 = vpack.c.b16 %v999, %v997
        %v1154 = vpack.c.b16 %v1000, %v998
        %v1155 = vpack.c.b16 %v1003, %v1001
        %v1156 = vpack.c.b16 %v1004, %v1002
        %v1157 = vpack.c.b16 %v1007, %v1005
        %v1158 = vpack.c.b16 %v1008, %v1006
        %v1159 = vpack.c.b16 %v1011, %v1009
        %v1160 = vpack.c.b16 %v1012, %v1010
        %v1161 = vpack.c.b16 %v1015, %v1013
        %v1162 = vpack.c.b16 %v1016, %v1014
        %v1163 = vpack.c.b16 %v1019, %v1017
        %v1164 = vpack.c.b16 %v1020, %v1018
        %v1165 = vpack.c.b16 %v1023, %v1021
        %v1166 = vpack.c.b16 %v1024, %v1022
        %v1167 = vpack.c.b16 %v1027, %v1025
        %v1168 = vpack.c.b16 %v1028, %v1026
        %v1169 = vpack.c.b16 %v1031, %v1029
        %v1170 = vpack.c.b16 %v1032, %v1030
        %v1171 = vpack.c.b16 %v1035, %v1033
        %v1172 = vpack.c.b16 %v1036, %v1034
        %v1173 = vpack.c.b16 %v1039, %v1037
        %v1174 = vpack.c.b16 %v1040, %v1038
        %v1175 = vpack.c.b16 %v1043, %v1041
        %v1176 = vpack.c.b16 %v1044, %v1042
        %v1177 = vpack.c.b16 %v1047, %v1045
        %v1178 = vpack.c.b16 %v1048, %v1046
        %v1179 = vpack.c.b16 %v1051, %v1049
        %v1180 = vpack.c.b16 %v1052, %v1050
        %v1181 = vpack.c.b16 %v1055, %v1053
        %v1182 = vpack.c.b16 %v1056, %v1054
        %v1183 = vpack.c.b16 %v1057, %v1057
        %v1184 = vpack.c.b16 %v1058, %v1058
        %vm1309 = vcmask 850944
        %v1311 = vsel %vm1309, %v546, 0
        %vm1313 = vcmask 1043456
        %v1315 = vsel %vm1313, %v1183, 0
        %v1318 = vsel %vm1313, %v1184, 0
        %1320 = vmatprep.subr.bf16.mxu0 %v1074
        %1321 = vmatpush1.bf16.msra.mxu0 %v1073
        %1322 = vmatprep.subr.bf16.mxu0 %v1072
        %1323 = vmatpush1.bf16.msra.mxu0 %v1071
        %1324 = vmatprep.subr.bf16.mxu0 %v1070
        %1325 = vmatpush1.bf16.msra.mxu0 %v1069
        %1326 = vmatprep.subr.bf16.mxu0 %v1068
        %1327 = vmatpush1.bf16.msra.mxu0 %v1067
        %1328 = vmatprep.subr.bf16.mxu0 %v1066
        %1329 = vmatpush1.bf16.msra.mxu0 %v1065
        %1330 = vmatprep.subr.bf16.mxu0 %v1064
        %1331 = vmatpush1.bf16.msra.mxu0 %v1063
        %1332 = vmatprep.subr.bf16.mxu0 %v1062
        %1333 = vmatpush1.bf16.msra.mxu0 %v1061
        %1334 = vmatprep.subr.bf16.mxu0 %v1060
        %1335 = vmatpush1.bf16.msra.mxu0 %v1059
        %1336 = vmatprep.subr.bf16.mxu0 %v1090
        %1337 = vmatpush2.bf16.msra.mxu0 %v1089
        %1338 = vmatprep.subr.bf16.mxu0 %v1088
        %1339 = vmatpush2.bf16.msra.mxu0 %v1087
        %1340 = vmatprep.subr.bf16.mxu0 %v1086
        %1341 = vmatpush2.bf16.msra.mxu0 %v1085
        %1342 = vmatprep.subr.bf16.mxu0 %v1084
        %1343 = vmatpush2.bf16.msra.mxu0 %v1083
        %1344 = vmatprep.subr.bf16.mxu0 %v1082
        %1345 = vmatpush2.bf16.msra.mxu0 %v1081
        %1346 = vmatprep.subr.bf16.mxu0 %v1080
        %1347 = vmatpush2.bf16.msra.mxu0 %v1079
        %1348 = vmatprep.subr.bf16.mxu0 %v1078
        %1349 = vmatpush2.bf16.msra.mxu0 %v1077
        %1350 = vmatprep.subr.bf16.mxu0 %v1076
        %1351 = vmatpush2.bf16.msra.mxu0 %v1075
        %1352 = vmatprep.mubr.bf16.mxu0 %v540
        %1353 = vmatmul.mubr.bf16.gmra.mxu0 %v539
        %v1354 = vpop.f32.mrf.mxu0
        %v1355 = vadd.f32 %v677, %v1354
        %v1356 = vpop.f32.mrf.mxu0
        %v1357 = vadd.f32 %v681, %v1356
        %v1358 = vpop.f32.mrf.mxu0
        %v1359 = vadd.f32 %v677, %v1358
        %v1360 = vpop.f32.mrf.mxu0
        %v1361 = vadd.f32 %v681, %v1360
        %1362 = vdwg.mxu0
        %1363 = vmatprep.subr.bf16.mxu0 %v1106
        %1364 = vmatpush1.bf16.msra.mxu0 %v1105
        %1365 = vmatprep.subr.bf16.mxu0 %v1104
        %1366 = vmatpush1.bf16.msra.mxu0 %v1103
        %1367 = vmatprep.subr.bf16.mxu0 %v1102
        %1368 = vmatpush1.bf16.msra.mxu0 %v1101
        %1369 = vmatprep.subr.bf16.mxu0 %v1100
        %1370 = vmatpush1.bf16.msra.mxu0 %v1099
        %1371 = vmatprep.subr.bf16.mxu0 %v1098
        %1372 = vmatpush1.bf16.msra.mxu0 %v1097
        %1373 = vmatprep.subr.bf16.mxu0 %v1096
        %1374 = vmatpush1.bf16.msra.mxu0 %v1095
        %1375 = vmatprep.subr.bf16.mxu0 %v1094
        %1376 = vmatpush1.bf16.msra.mxu0 %v1093
        %1377 = vmatprep.subr.bf16.mxu0 %v1092
        %1378 = vmatpush1.bf16.msra.mxu0 %v1091
        %1379 = vmatprep.subr.bf16.mxu0 %v1122
        %1380 = vmatpush2.bf16.msra.mxu0 %v1121
        %1381 = vmatprep.subr.bf16.mxu0 %v1120
        %1382 = vmatpush2.bf16.msra.mxu0 %v1119
        %1383 = vmatprep.subr.bf16.mxu0 %v1118
        %1384 = vmatpush2.bf16.msra.mxu0 %v1117
        %1385 = vmatprep.subr.bf16.mxu0 %v1116
        %1386 = vmatpush2.bf16.msra.mxu0 %v1115
        %1387 = vmatprep.subr.bf16.mxu0 %v1114
        %1388 = vmatpush2.bf16.msra.mxu0 %v1113
        %1389 = vmatprep.subr.bf16.mxu0 %v1112
        %1390 = vmatpush2.bf16.msra.mxu0 %v1111
        %1391 = vmatprep.subr.bf16.mxu0 %v1110
        %1392 = vmatpush2.bf16.msra.mxu0 %v1109
        %1393 = vmatprep.subr.bf16.mxu0 %v1108
        %1394 = vmatpush2.bf16.msra.mxu0 %v1107
        %1395 = vmatprep.mubr.bf16.mxu0 %v542
        %1396 = vmatmul.mubr.bf16.gmra.mxu0 %v541
        %v1397 = vpop.f32.mrf.mxu0
        %v1398 = vadd.f32 %v1355, %v1397
        %v1399 = vpop.f32.mrf.mxu0
        %v1400 = vadd.f32 %v1357, %v1399
        %v1401 = vpop.f32.mrf.mxu0
        %v1402 = vadd.f32 %v1359, %v1401
        %v1403 = vpop.f32.mrf.mxu0
        %v1404 = vadd.f32 %v1361, %v1403
        %1405 = vdwg.mxu0
        %1406 = vmatprep.subr.bf16.mxu0 %v1138
        %1407 = vmatpush1.bf16.msra.mxu0 %v1137
        %1408 = vmatprep.subr.bf16.mxu0 %v1136
        %1409 = vmatpush1.bf16.msra.mxu0 %v1135
        %1410 = vmatprep.subr.bf16.mxu0 %v1134
        %1411 = vmatpush1.bf16.msra.mxu0 %v1133
        %1412 = vmatprep.subr.bf16.mxu0 %v1132
        %1413 = vmatpush1.bf16.msra.mxu0 %v1131
        %1414 = vmatprep.subr.bf16.mxu0 %v1130
        %1415 = vmatpush1.bf16.msra.mxu0 %v1129
        %1416 = vmatprep.subr.bf16.mxu0 %v1128
        %1417 = vmatpush1.bf16.msra.mxu0 %v1127
        %1418 = vmatprep.subr.bf16.mxu0 %v1126
        %1419 = vmatpush1.bf16.msra.mxu0 %v1125
        %1420 = vmatprep.subr.bf16.mxu0 %v1124
        %1421 = vmatpush1.bf16.msra.mxu0 %v1123
        %1422 = vmatprep.subr.bf16.mxu0 %v1154
        %1423 = vmatpush2.bf16.msra.mxu0 %v1153
        %1424 = vmatprep.subr.bf16.mxu0 %v1152
        %1425 = vmatpush2.bf16.msra.mxu0 %v1151
        %1426 = vmatprep.subr.bf16.mxu0 %v1150
        %1427 = vmatpush2.bf16.msra.mxu0 %v1149
        %1428 = vmatprep.subr.bf16.mxu0 %v1148
        %1429 = vmatpush2.bf16.msra.mxu0 %v1147
        %1430 = vmatprep.subr.bf16.mxu0 %v1146
        %1431 = vmatpush2.bf16.msra.mxu0 %v1145
        %1432 = vmatprep.subr.bf16.mxu0 %v1144
        %1433 = vmatpush2.bf16.msra.mxu0 %v1143
        %1434 = vmatprep.subr.bf16.mxu0 %v1142
        %1435 = vmatpush2.bf16.msra.mxu0 %v1141
        %1436 = vmatprep.subr.bf16.mxu0 %v1140
        %1437 = vmatpush2.bf16.msra.mxu0 %v1139
        %1438 = vmatprep.mubr.bf16.mxu0 %v544
        %1439 = vmatmul.mubr.bf16.gmra.mxu0 %v543
        %v1440 = vpop.f32.mrf.mxu0
        %v1441 = vadd.f32 %v1398, %v1440
        %v1442 = vpop.f32.mrf.mxu0
        %v1443 = vadd.f32 %v1400, %v1442
        %v1444 = vpop.f32.mrf.mxu0
        %v1445 = vadd.f32 %v1402, %v1444
        %v1446 = vpop.f32.mrf.mxu0
        %v1447 = vadd.f32 %v1404, %v1446
        %1448 = vdwg.mxu0
        %1449 = vmatprep.subr.bf16.mxu0 %v1170
        %1450 = vmatpush1.bf16.msra.mxu0 %v1169
        %1451 = vmatprep.subr.bf16.mxu0 %v1168
        %1452 = vmatpush1.bf16.msra.mxu0 %v1167
        %1453 = vmatprep.subr.bf16.mxu0 %v1166
        %1454 = vmatpush1.bf16.msra.mxu0 %v1165
        %1455 = vmatprep.subr.bf16.mxu0 %v1164
        %1456 = vmatpush1.bf16.msra.mxu0 %v1163
        %1457 = vmatprep.subr.bf16.mxu0 %v1162
        %1458 = vmatpush1.bf16.msra.mxu0 %v1161
        %1459 = vmatprep.subr.bf16.mxu0 %v1160
        %1460 = vmatpush1.bf16.msra.mxu0 %v1159
        %1461 = vmatprep.subr.bf16.mxu0 %v1158
        %1462 = vmatpush1.bf16.msra.mxu0 %v1157
        %1463 = vmatprep.subr.bf16.mxu0 %v1156
        %1464 = vmatpush1.bf16.msra.mxu0 %v1155
        %1465 = vmatprep.subr.bf16.mxu0 0
        %1466 = vmatpush2.bf16.msra.mxu0 0
        %1467 = vmatprep.subr.bf16.mxu0 %v1318
        %1468 = vmatpush2.bf16.msra.mxu0 %v1315
        %1469 = vmatprep.subr.bf16.mxu0 %v1182
        %1470 = vmatpush2.bf16.msra.mxu0 %v1181
        %1471 = vmatprep.subr.bf16.mxu0 %v1180
        %1472 = vmatpush2.bf16.msra.mxu0 %v1179
        %1473 = vmatprep.subr.bf16.mxu0 %v1178
        %1474 = vmatpush2.bf16.msra.mxu0 %v1177
        %1475 = vmatprep.subr.bf16.mxu0 %v1176
        %1476 = vmatpush2.bf16.msra.mxu0 %v1175
        %1477 = vmatprep.subr.bf16.mxu0 %v1174
        %1478 = vmatpush2.bf16.msra.mxu0 %v1173
        %1479 = vmatprep.subr.bf16.mxu0 %v1172
        %1480 = vmatpush2.bf16.msra.mxu0 %v1171
        %1481 = vmatprep.mubr.bf16.mxu0 %v1311
        %1482 = vmatmul.mubr.bf16.gmra.mxu0 %v545
        %v1483 = vpop.f32.mrf.mxu0
        %v1484 = vadd.f32 %v1441, %v1483
        %v1485 = vpop.f32.mrf.mxu0
        %v1486 = vadd.f32 %v1443, %v1485
        %v1487 = vpop.f32.mrf.mxu0
        %v1488 = vadd.f32 %v1445, %v1487
        %v1489 = vpop.f32.mrf.mxu0
        %v1490 = vadd.f32 %v1447, %v1489
        %1491 = vdwg.mxu0
        %v1492 = vmax.f32 %v1484, 0.0
        %v1493 = vmax.f32 %v1486, 0.0
        %v1494 = vmax.f32 %v1488, 0.0
        %v1495 = vmax.f32 %v1490, 0.0
        %v1496 = vld [vmem:[%s455] sm:$0xff]
        %v1497 = vld [vmem:[%s455 + $0x8] sm:$0xff]
        %v1498 = vld [vmem:[%s455 + $0x10] sm:$0xff]
        %v1499 = vld [vmem:[%s455 + $0x18] sm:$0xff]
        %v1500 = vld [vmem:[%s455 + $0x20] sm:$0xff]
        %v1501 = vld [vmem:[%s455 + $0x28] sm:$0xff]
        %v1502 = vld [vmem:[%s455 + $0x30] sm:$0xff]
        %v1503 = vld [vmem:[%s455 + $0x38] sm:$0xff]
        %v1504 = vld [vmem:[%s455 + $0x40] sm:$0xff]
        %v1505 = vld [vmem:[%s455 + $0x48] sm:$0xff]
        %v1506 = vld [vmem:[%s455 + $0x50] sm:$0xff]
        %v1507 = vld [vmem:[%s455 + $0x58] sm:$0xff]
        %v1508 = vld [vmem:[%s455 + $0x60] sm:$0xff]
        %v1509 = vld [vmem:[%s455 + $0x68] sm:$0xff]
        %v1510 = vpack.c.bf16 %v1503, %v1496
        %v1511 = vpack.c.bf16 %v1504, %v1497
        %v1512 = vpack.c.bf16 %v1505, %v1498
        %v1513 = vpack.c.bf16 %v1506, %v1499
        %v1514 = vpack.c.bf16 %v1507, %v1500
        %v1515 = vpack.c.bf16 %v1508, %v1501
        %v1516 = vpack.c.bf16 %v1509, %v1502
        %v1517 = vld [vmem:[#allocation8] sm:$0xff]
        %v1518 = vld [vmem:[#allocation8 + $0x8] sm:$0xff]
        %v1519 = vld [vmem:[#allocation8 + $0x10] sm:$0xff]
        %v1520 = vld [vmem:[#allocation8 + $0x18] sm:$0xff]
        %v1521 = vld [vmem:[#allocation8 + $0x20] sm:$0xff]
        %v1522 = vld [vmem:[#allocation8 + $0x28] sm:$0xff]
        %v1523 = vld [vmem:[#allocation8 + $0x30] sm:$0xff]
        %v1524 = vld [vmem:[#allocation8 + $0x38] sm:$0xff]
        %v1525 = vld [vmem:[#allocation8 + $0x40] sm:$0xff]
        %v1526 = vld [vmem:[#allocation8 + $0x48] sm:$0xff]
        %v1527 = vld [vmem:[#allocation8 + $0x50] sm:$0xff]
        %v1528 = vld [vmem:[#allocation8 + $0x58] sm:$0xff]
        %v1529 = vld [vmem:[#allocation8 + $0x60] sm:$0xff]
        %v1530 = vld [vmem:[#allocation8 + $0x68] sm:$0xff]
        %v1531 = vld [vmem:[#allocation8 + $0x70] sm:$0xff]
        %v1532 = vld [vmem:[#allocation8 + $0x78] sm:$0xff]
        %v1533 = vld [vmem:[#allocation8 + $0x80] sm:$0xff]
        %v1534 = vld [vmem:[#allocation8 + $0x88] sm:$0xff]
        %v1535 = vld [vmem:[#allocation8 + $0x90] sm:$0xff]
        %v1536 = vld [vmem:[#allocation8 + $0x98] sm:$0xff]
        %v1537 = vld [vmem:[#allocation8 + $0xa0] sm:$0xff]
        %v1538 = vld [vmem:[#allocation8 + $0xa8] sm:$0xff]
        %v1539 = vld [vmem:[#allocation8 + $0xb0] sm:$0xff]
        %v1540 = vld [vmem:[#allocation8 + $0xb8] sm:$0xff]
        %v1541 = vld [vmem:[#allocation8 + $0xc0] sm:$0xff]
        %v1542 = vld [vmem:[#allocation8 + $0xc8] sm:$0xff]
        %v1543 = vld [vmem:[#allocation8 + $0xd0] sm:$0xff]
        %v1544 = vld [vmem:[#allocation8 + $0xd8] sm:$0xff]
        %v1545 = vld [vmem:[#allocation8 + $0xe0] sm:$0xff]
        %v1546 = vld [vmem:[#allocation8 + $0xe8] sm:$0xff]
        %v1547 = vld [vmem:[#allocation8 + $0xf0] sm:$0xff]
        %v1548 = vld [vmem:[#allocation8 + $0xf8] sm:$0xff]
        %v1549 = vld [vmem:[#allocation8 + $0x100] sm:$0xff]
        %v1550 = vld [vmem:[#allocation8 + $0x108] sm:$0xff]
        %v1551 = vld [vmem:[#allocation8 + $0x110] sm:$0xff]
        %v1552 = vld [vmem:[#allocation8 + $0x118] sm:$0xff]
        %v1553 = vld [vmem:[#allocation8 + $0x120] sm:$0xff]
        %v1554 = vld [vmem:[#allocation8 + $0x128] sm:$0xff]
        %v1555 = vld [vmem:[#allocation8 + $0x130] sm:$0xff]
        %v1556 = vld [vmem:[#allocation8 + $0x138] sm:$0xff]
        %v1557 = vld [vmem:[#allocation8 + $0x140] sm:$0xff]
        %v1558 = vld [vmem:[#allocation8 + $0x148] sm:$0xff]
        %v1559 = vld [vmem:[#allocation8 + $0x150] sm:$0xff]
        %v1560 = vld [vmem:[#allocation8 + $0x158] sm:$0xff]
        %v1561 = vld [vmem:[#allocation8 + $0x160] sm:$0xff]
        %v1562 = vld [vmem:[#allocation8 + $0x168] sm:$0xff]
        %v1563 = vld [vmem:[#allocation8 + $0x170] sm:$0xff]
        %v1564 = vld [vmem:[#allocation8 + $0x178] sm:$0xff]
        %v1565 = vld [vmem:[#allocation8 + $0x180] sm:$0xff]
        %v1566 = vld [vmem:[#allocation8 + $0x188] sm:$0xff]
        %v1567 = vld [vmem:[#allocation8 + $0x190] sm:$0xff]
        %v1568 = vld [vmem:[#allocation8 + $0x198] sm:$0xff]
        %v1569 = vld [vmem:[#allocation8 + $0x1a0] sm:$0xff]
        %v1570 = vld [vmem:[#allocation8 + $0x1a8] sm:$0xff]
        %v1571 = vld [vmem:[#allocation8 + $0x1b0] sm:$0xff]
        %v1572 = vld [vmem:[#allocation8 + $0x1b8] sm:$0xff]
        %v1573 = vld [vmem:[#allocation8 + $0x1c0] sm:$0xff]
        %v1574 = vld [vmem:[#allocation8 + $0x1c8] sm:$0xff]
        %v1575 = vld [vmem:[#allocation8 + $0x1d0] sm:$0xff]
        %v1576 = vld [vmem:[#allocation8 + $0x1d8] sm:$0xff]
        %v1577 = vld [vmem:[#allocation8 + $0x1e0] sm:$0xff]
        %v1578 = vld [vmem:[#allocation8 + $0x1e8] sm:$0xff]
        %v1579 = vld [vmem:[#allocation8 + $0x1f0] sm:$0xff]
        %v1580 = vld [vmem:[#allocation8 + $0x1f8] sm:$0xff]
        %v1581 = vld [vmem:[#allocation8 + $0x200] sm:$0xff]
        %v1582 = vld [vmem:[#allocation8 + $0x208] sm:$0xff]
        %v1583 = vld [vmem:[#allocation8 + $0x210] sm:$0xff]
        %v1584 = vld [vmem:[#allocation8 + $0x218] sm:$0xff]
        %v1585 = vld [vmem:[#allocation8 + $0x220] sm:$0xff]
        %v1586 = vld [vmem:[#allocation8 + $0x228] sm:$0xff]
        %v1587 = vld [vmem:[#allocation8 + $0x230] sm:$0xff]
        %v1588 = vld [vmem:[#allocation8 + $0x238] sm:$0xff]
        %v1589 = vld [vmem:[#allocation8 + $0x240] sm:$0xff]
        %v1590 = vld [vmem:[#allocation8 + $0x248] sm:$0xff]
        %v1591 = vld [vmem:[#allocation8 + $0x250] sm:$0xff]
        %v1592 = vld [vmem:[#allocation8 + $0x258] sm:$0xff]
        %v1593 = vld [vmem:[#allocation8 + $0x260] sm:$0xff]
        %v1594 = vld [vmem:[#allocation8 + $0x268] sm:$0xff]
        %v1595 = vld [vmem:[#allocation8 + $0x270] sm:$0xff]
        %v1596 = vld [vmem:[#allocation8 + $0x278] sm:$0xff]
        %v1597 = vld [vmem:[#allocation8 + $0x280] sm:$0xff]
        %v1598 = vld [vmem:[#allocation8 + $0x288] sm:$0xff]
        %v1599 = vld [vmem:[#allocation8 + $0x290] sm:$0xff]
        %v1600 = vld [vmem:[#allocation8 + $0x298] sm:$0xff]
        %v1601 = vld [vmem:[#allocation8 + $0x2a0] sm:$0xff]
        %v1602 = vld [vmem:[#allocation8 + $0x2a8] sm:$0xff]
        %v1603 = vld [vmem:[#allocation8 + $0x2b0] sm:$0xff]
        %v1604 = vld [vmem:[#allocation8 + $0x2b8] sm:$0xff]
        %v1605 = vld [vmem:[#allocation8 + $0x2c0] sm:$0xff]
        %v1606 = vld [vmem:[#allocation8 + $0x2c8] sm:$0xff]
        %v1607 = vld [vmem:[#allocation8 + $0x2d0] sm:$0xff]
        %v1608 = vld [vmem:[#allocation8 + $0x2d8] sm:$0xff]
        %v1609 = vld [vmem:[#allocation8 + $0x2e0] sm:$0xff]
        %v1610 = vld [vmem:[#allocation8 + $0x2e8] sm:$0xff]
        %v1611 = vld [vmem:[#allocation8 + $0x2f0] sm:$0xff]
        %v1612 = vld [vmem:[#allocation8 + $0x2f8] sm:$0xff]
        %v1613 = vld [vmem:[#allocation8 + $0x300] sm:$0xff]
        %v1614 = vld [vmem:[#allocation8 + $0x308] sm:$0xff]
        %v1615 = vld [vmem:[#allocation8 + $0x310] sm:$0xff]
        %v1616 = vld [vmem:[#allocation8 + $0x318] sm:$0xff]
        %v1617 = vld [vmem:[%s5] sm:$0x3]
        %v1619 = vlaneseq
        %v1620 = vshrl.u32 %v1619, 7
        %v1621 = vsub.s32 0, %v1620
        %v1622 = vrot.slane %v1617, %v1621
        %v1623 = vlaneseq
        %v1624 = vshrl.u32 %v1623, 7
        %v1625 = vsub.s32 1, %v1624
        %v1626 = vrot.slane %v1617, %v1625
        %v1729 = vunpack.c.l.b16 %v1517
        %v1730 = vunpack.c.h.b16 %v1517
        %v1731 = vunpack.c.l.b16 %v1518
        %v1732 = vunpack.c.h.b16 %v1518
        %v1733 = vunpack.c.l.b16 %v1519
        %v1734 = vunpack.c.h.b16 %v1519
        %v1735 = vunpack.c.l.b16 %v1520
        %v1736 = vunpack.c.h.b16 %v1520
        %v1737 = vunpack.c.l.b16 %v1521
        %v1738 = vunpack.c.h.b16 %v1521
        %v1739 = vunpack.c.l.b16 %v1522
        %v1740 = vunpack.c.h.b16 %v1522
        %v1741 = vunpack.c.l.b16 %v1523
        %v1742 = vunpack.c.h.b16 %v1523
        %v1743 = vunpack.c.l.b16 %v1524
        %v1744 = vunpack.c.h.b16 %v1524
        %v1745 = vunpack.c.l.b16 %v1525
        %v1746 = vunpack.c.h.b16 %v1525
        %v1747 = vunpack.c.l.b16 %v1526
        %v1748 = vunpack.c.h.b16 %v1526
        %v1749 = vunpack.c.l.b16 %v1527
        %v1750 = vunpack.c.h.b16 %v1527
        %v1751 = vunpack.c.l.b16 %v1528
        %v1752 = vunpack.c.h.b16 %v1528
        %v1753 = vunpack.c.l.b16 %v1529
        %v1754 = vunpack.c.h.b16 %v1529
        %v1755 = vunpack.c.l.b16 %v1530
        %v1756 = vunpack.c.h.b16 %v1530
        %v1757 = vunpack.c.l.b16 %v1531
        %v1758 = vunpack.c.h.b16 %v1531
        %v1759 = vunpack.c.l.b16 %v1532
        %v1760 = vunpack.c.h.b16 %v1532
        %v1761 = vunpack.c.l.b16 %v1533
        %v1762 = vunpack.c.h.b16 %v1533
        %v1763 = vunpack.c.l.b16 %v1534
        %v1764 = vunpack.c.h.b16 %v1534
        %v1765 = vunpack.c.l.b16 %v1535
        %v1766 = vunpack.c.h.b16 %v1535
        %v1767 = vunpack.c.l.b16 %v1536
        %v1768 = vunpack.c.h.b16 %v1536
        %v1769 = vunpack.c.l.b16 %v1537
        %v1770 = vunpack.c.h.b16 %v1537
        %v1771 = vunpack.c.l.b16 %v1538
        %v1772 = vunpack.c.h.b16 %v1538
        %v1773 = vunpack.c.l.b16 %v1539
        %v1774 = vunpack.c.h.b16 %v1539
        %v1775 = vunpack.c.l.b16 %v1540
        %v1776 = vunpack.c.h.b16 %v1540
        %v1777 = vunpack.c.l.b16 %v1541
        %v1778 = vunpack.c.h.b16 %v1541
        %v1779 = vunpack.c.l.b16 %v1542
        %v1780 = vunpack.c.h.b16 %v1542
        %v1781 = vunpack.c.l.b16 %v1543
        %v1782 = vunpack.c.h.b16 %v1543
        %v1783 = vunpack.c.l.b16 %v1544
        %v1784 = vunpack.c.h.b16 %v1544
        %v1785 = vunpack.c.l.b16 %v1545
        %v1786 = vunpack.c.h.b16 %v1545
        %v1787 = vunpack.c.l.b16 %v1546
        %v1788 = vunpack.c.h.b16 %v1546
        %v1789 = vunpack.c.l.b16 %v1547
        %v1790 = vunpack.c.h.b16 %v1547
        %v1791 = vunpack.c.l.b16 %v1548
        %v1792 = vunpack.c.h.b16 %v1548
        %v1793 = vunpack.c.l.b16 %v1549
        %v1794 = vunpack.c.h.b16 %v1549
        %v1795 = vunpack.c.l.b16 %v1550
        %v1796 = vunpack.c.h.b16 %v1550
        %v1797 = vunpack.c.l.b16 %v1551
        %v1798 = vunpack.c.h.b16 %v1551
        %v1799 = vunpack.c.l.b16 %v1552
        %v1800 = vunpack.c.h.b16 %v1552
        %v1801 = vunpack.c.l.b16 %v1553
        %v1802 = vunpack.c.h.b16 %v1553
        %v1803 = vunpack.c.l.b16 %v1554
        %v1804 = vunpack.c.h.b16 %v1554
        %v1805 = vunpack.c.l.b16 %v1555
        %v1806 = vunpack.c.h.b16 %v1555
        %v1807 = vunpack.c.l.b16 %v1556
        %v1808 = vunpack.c.h.b16 %v1556
        %v1809 = vunpack.c.l.b16 %v1557
        %v1810 = vunpack.c.h.b16 %v1557
        %v1811 = vunpack.c.l.b16 %v1558
        %v1812 = vunpack.c.h.b16 %v1558
        %v1813 = vunpack.c.l.b16 %v1559
        %v1814 = vunpack.c.h.b16 %v1559
        %v1815 = vunpack.c.l.b16 %v1560
        %v1816 = vunpack.c.h.b16 %v1560
        %v1817 = vunpack.c.l.b16 %v1561
        %v1818 = vunpack.c.h.b16 %v1561
        %v1819 = vunpack.c.l.b16 %v1562
        %v1820 = vunpack.c.h.b16 %v1562
        %v1821 = vunpack.c.l.b16 %v1563
        %v1822 = vunpack.c.h.b16 %v1563
        %v1823 = vunpack.c.l.b16 %v1564
        %v1824 = vunpack.c.h.b16 %v1564
        %v1825 = vunpack.c.l.b16 %v1565
        %v1826 = vunpack.c.h.b16 %v1565
        %v1827 = vunpack.c.l.b16 %v1566
        %v1828 = vunpack.c.h.b16 %v1566
        %v1829 = vunpack.c.l.b16 %v1567
        %v1830 = vunpack.c.h.b16 %v1567
        %v1831 = vunpack.c.l.b16 %v1568
        %v1832 = vunpack.c.h.b16 %v1568
        %v1833 = vunpack.c.l.b16 %v1569
        %v1834 = vunpack.c.h.b16 %v1569
        %v1835 = vunpack.c.l.b16 %v1570
        %v1836 = vunpack.c.h.b16 %v1570
        %v1837 = vunpack.c.l.b16 %v1571
        %v1838 = vunpack.c.h.b16 %v1571
        %v1839 = vunpack.c.l.b16 %v1572
        %v1840 = vunpack.c.h.b16 %v1572
        %v1841 = vunpack.c.l.b16 %v1573
        %v1842 = vunpack.c.h.b16 %v1573
        %v1843 = vunpack.c.l.b16 %v1574
        %v1844 = vunpack.c.h.b16 %v1574
        %v1845 = vunpack.c.l.b16 %v1575
        %v1846 = vunpack.c.h.b16 %v1575
        %v1847 = vunpack.c.l.b16 %v1576
        %v1848 = vunpack.c.h.b16 %v1576
        %v1849 = vunpack.c.l.b16 %v1577
        %v1850 = vunpack.c.h.b16 %v1577
        %v1851 = vunpack.c.l.b16 %v1578
        %v1852 = vunpack.c.h.b16 %v1578
        %v1853 = vunpack.c.l.b16 %v1579
        %v1854 = vunpack.c.h.b16 %v1579
        %v1855 = vunpack.c.l.b16 %v1580
        %v1856 = vunpack.c.h.b16 %v1580
        %v1857 = vunpack.c.l.b16 %v1581
        %v1858 = vunpack.c.h.b16 %v1581
        %v1859 = vunpack.c.l.b16 %v1582
        %v1860 = vunpack.c.h.b16 %v1582
        %v1861 = vunpack.c.l.b16 %v1583
        %v1862 = vunpack.c.h.b16 %v1583
        %v1863 = vunpack.c.l.b16 %v1584
        %v1864 = vunpack.c.h.b16 %v1584
        %v1865 = vunpack.c.l.b16 %v1585
        %v1866 = vunpack.c.h.b16 %v1585
        %v1867 = vunpack.c.l.b16 %v1586
        %v1868 = vunpack.c.h.b16 %v1586
        %v1869 = vunpack.c.l.b16 %v1587
        %v1870 = vunpack.c.h.b16 %v1587
        %v1871 = vunpack.c.l.b16 %v1588
        %v1872 = vunpack.c.h.b16 %v1588
        %v1873 = vunpack.c.l.b16 %v1589
        %v1874 = vunpack.c.h.b16 %v1589
        %v1875 = vunpack.c.l.b16 %v1590
        %v1876 = vunpack.c.h.b16 %v1590
        %v1877 = vunpack.c.l.b16 %v1591
        %v1878 = vunpack.c.h.b16 %v1591
        %v1879 = vunpack.c.l.b16 %v1592
        %v1880 = vunpack.c.h.b16 %v1592
        %v1881 = vunpack.c.l.b16 %v1593
        %v1882 = vunpack.c.h.b16 %v1593
        %v1883 = vunpack.c.l.b16 %v1594
        %v1884 = vunpack.c.h.b16 %v1594
        %v1885 = vunpack.c.l.b16 %v1595
        %v1886 = vunpack.c.h.b16 %v1595
        %v1887 = vunpack.c.l.b16 %v1596
        %v1888 = vunpack.c.h.b16 %v1596
        %v1889 = vunpack.c.l.b16 %v1597
        %v1890 = vunpack.c.h.b16 %v1597
        %v1891 = vunpack.c.l.b16 %v1598
        %v1892 = vunpack.c.h.b16 %v1598
        %v1893 = vunpack.c.l.b16 %v1599
        %v1894 = vunpack.c.h.b16 %v1599
        %v1895 = vunpack.c.l.b16 %v1600
        %v1896 = vunpack.c.h.b16 %v1600
        %v1897 = vunpack.c.l.b16 %v1601
        %v1898 = vunpack.c.h.b16 %v1601
        %v1899 = vunpack.c.l.b16 %v1602
        %v1900 = vunpack.c.h.b16 %v1602
        %v1901 = vunpack.c.l.b16 %v1603
        %v1902 = vunpack.c.h.b16 %v1603
        %v1903 = vunpack.c.l.b16 %v1604
        %v1904 = vunpack.c.h.b16 %v1604
        %v1905 = vunpack.c.l.b16 %v1605
        %v1906 = vunpack.c.h.b16 %v1605
        %v1907 = vunpack.c.l.b16 %v1606
        %v1908 = vunpack.c.h.b16 %v1606
        %v1909 = vunpack.c.l.b16 %v1607
        %v1910 = vunpack.c.h.b16 %v1607
        %v1911 = vunpack.c.l.b16 %v1608
        %v1912 = vunpack.c.h.b16 %v1608
        %v1913 = vunpack.c.l.b16 %v1609
        %v1914 = vunpack.c.h.b16 %v1609
        %v1915 = vunpack.c.l.b16 %v1610
        %v1916 = vunpack.c.h.b16 %v1610
        %v1917 = vunpack.c.l.b16 %v1611
        %v1918 = vunpack.c.h.b16 %v1611
        %v1919 = vunpack.c.l.b16 %v1612
        %v1920 = vunpack.c.h.b16 %v1612
        %v1921 = vunpack.c.l.b16 %v1613
        %v1922 = vunpack.c.h.b16 %v1613
        %v1923 = vunpack.c.l.b16 %v1614
        %v1924 = vunpack.c.h.b16 %v1614
        %v1925 = vunpack.c.l.b16 %v1615
        %v1926 = vunpack.c.h.b16 %v1615
        %v1927 = vunpack.c.l.b16 %v1616
        %v1928 = vunpack.c.h.b16 %v1616
        %v1929 = vpack.c.b16 %v1731, %v1729
        %v1930 = vpack.c.b16 %v1732, %v1730
        %v1931 = vpack.c.b16 %v1735, %v1733
        %v1932 = vpack.c.b16 %v1736, %v1734
        %v1933 = vpack.c.b16 %v1739, %v1737
        %v1934 = vpack.c.b16 %v1740, %v1738
        %v1935 = vpack.c.b16 %v1743, %v1741
        %v1936 = vpack.c.b16 %v1744, %v1742
        %v1937 = vpack.c.b16 %v1747, %v1745
        %v1938 = vpack.c.b16 %v1748, %v1746
        %v1939 = vpack.c.b16 %v1751, %v1749
        %v1940 = vpack.c.b16 %v1752, %v1750
        %v1941 = vpack.c.b16 %v1755, %v1753
        %v1942 = vpack.c.b16 %v1756, %v1754
        %v1943 = vpack.c.b16 %v1759, %v1757
        %v1944 = vpack.c.b16 %v1760, %v1758
        %v1945 = vpack.c.b16 %v1763, %v1761
        %v1946 = vpack.c.b16 %v1764, %v1762
        %v1947 = vpack.c.b16 %v1767, %v1765
        %v1948 = vpack.c.b16 %v1768, %v1766
        %v1949 = vpack.c.b16 %v1771, %v1769
        %v1950 = vpack.c.b16 %v1772, %v1770
        %v1951 = vpack.c.b16 %v1775, %v1773
        %v1952 = vpack.c.b16 %v1776, %v1774
        %v1953 = vpack.c.b16 %v1779, %v1777
        %v1954 = vpack.c.b16 %v1780, %v1778
        %v1955 = vpack.c.b16 %v1783, %v1781
        %v1956 = vpack.c.b16 %v1784, %v1782
        %v1957 = vpack.c.b16 %v1787, %v1785
        %v1958 = vpack.c.b16 %v1788, %v1786
        %v1959 = vpack.c.b16 %v1791, %v1789
        %v1960 = vpack.c.b16 %v1792, %v1790
        %v1961 = vpack.c.b16 %v1795, %v1793
        %v1962 = vpack.c.b16 %v1796, %v1794
        %v1963 = vpack.c.b16 %v1799, %v1797
        %v1964 = vpack.c.b16 %v1800, %v1798
        %v1965 = vpack.c.b16 %v1803, %v1801
        %v1966 = vpack.c.b16 %v1804, %v1802
        %v1967 = vpack.c.b16 %v1807, %v1805
        %v1968 = vpack.c.b16 %v1808, %v1806
        %v1969 = vpack.c.b16 %v1811, %v1809
        %v1970 = vpack.c.b16 %v1812, %v1810
        %v1971 = vpack.c.b16 %v1815, %v1813
        %v1972 = vpack.c.b16 %v1816, %v1814
        %v1973 = vpack.c.b16 %v1819, %v1817
        %v1974 = vpack.c.b16 %v1820, %v1818
        %v1975 = vpack.c.b16 %v1823, %v1821
        %v1976 = vpack.c.b16 %v1824, %v1822
        %v1977 = vpack.c.b16 %v1827, %v1825
        %v1978 = vpack.c.b16 %v1828, %v1826
        %v1979 = vpack.c.b16 %v1831, %v1829
        %v1980 = vpack.c.b16 %v1832, %v1830
        %v1981 = vpack.c.b16 %v1835, %v1833
        %v1982 = vpack.c.b16 %v1836, %v1834
        %v1983 = vpack.c.b16 %v1839, %v1837
        %v1984 = vpack.c.b16 %v1840, %v1838
        %v1985 = vpack.c.b16 %v1843, %v1841
        %v1986 = vpack.c.b16 %v1844, %v1842
        %v1987 = vpack.c.b16 %v1847, %v1845
        %v1988 = vpack.c.b16 %v1848, %v1846
        %v1989 = vpack.c.b16 %v1851, %v1849
        %v1990 = vpack.c.b16 %v1852, %v1850
        %v1991 = vpack.c.b16 %v1855, %v1853
        %v1992 = vpack.c.b16 %v1856, %v1854
        %v1993 = vpack.c.b16 %v1859, %v1857
        %v1994 = vpack.c.b16 %v1860, %v1858
        %v1995 = vpack.c.b16 %v1863, %v1861
        %v1996 = vpack.c.b16 %v1864, %v1862
        %v1997 = vpack.c.b16 %v1867, %v1865
        %v1998 = vpack.c.b16 %v1868, %v1866
        %v1999 = vpack.c.b16 %v1871, %v1869
        %v2000 = vpack.c.b16 %v1872, %v1870
        %v2001 = vpack.c.b16 %v1875, %v1873
        %v2002 = vpack.c.b16 %v1876, %v1874
        %v2003 = vpack.c.b16 %v1879, %v1877
        %v2004 = vpack.c.b16 %v1880, %v1878
        %v2005 = vpack.c.b16 %v1883, %v1881
        %v2006 = vpack.c.b16 %v1884, %v1882
        %v2007 = vpack.c.b16 %v1887, %v1885
        %v2008 = vpack.c.b16 %v1888, %v1886
        %v2009 = vpack.c.b16 %v1891, %v1889
        %v2010 = vpack.c.b16 %v1892, %v1890
        %v2011 = vpack.c.b16 %v1895, %v1893
        %v2012 = vpack.c.b16 %v1896, %v1894
        %v2013 = vpack.c.b16 %v1899, %v1897
        %v2014 = vpack.c.b16 %v1900, %v1898
        %v2015 = vpack.c.b16 %v1903, %v1901
        %v2016 = vpack.c.b16 %v1904, %v1902
        %v2017 = vpack.c.b16 %v1907, %v1905
        %v2018 = vpack.c.b16 %v1908, %v1906
        %v2019 = vpack.c.b16 %v1911, %v1909
        %v2020 = vpack.c.b16 %v1912, %v1910
        %v2021 = vpack.c.b16 %v1915, %v1913
        %v2022 = vpack.c.b16 %v1916, %v1914
        %v2023 = vpack.c.b16 %v1919, %v1917
        %v2024 = vpack.c.b16 %v1920, %v1918
        %v2025 = vpack.c.b16 %v1923, %v1921
        %v2026 = vpack.c.b16 %v1924, %v1922
        %v2027 = vpack.c.b16 %v1927, %v1925
        %v2028 = vpack.c.b16 %v1928, %v1926
        %vm2129 = vcmask 261120
        %v2131 = vsel %vm2129, %v1516, 0
        %2133 = vmatprep.subr.bf16.mxu0 %v1944
        %2134 = vmatpush1.bf16.msra.mxu0 %v1943
        %2135 = vmatprep.subr.bf16.mxu0 %v1942
        %2136 = vmatpush1.bf16.msra.mxu0 %v1941
        %2137 = vmatprep.subr.bf16.mxu0 %v1940
        %2138 = vmatpush1.bf16.msra.mxu0 %v1939
        %2139 = vmatprep.subr.bf16.mxu0 %v1938
        %2140 = vmatpush1.bf16.msra.mxu0 %v1937
        %2141 = vmatprep.subr.bf16.mxu0 %v1936
        %2142 = vmatpush1.bf16.msra.mxu0 %v1935
        %2143 = vmatprep.subr.bf16.mxu0 %v1934
        %2144 = vmatpush1.bf16.msra.mxu0 %v1933
        %2145 = vmatprep.subr.bf16.mxu0 %v1932
        %2146 = vmatpush1.bf16.msra.mxu0 %v1931
        %2147 = vmatprep.subr.bf16.mxu0 %v1930
        %2148 = vmatpush1.bf16.msra.mxu0 %v1929
        %2149 = vmatprep.subr.bf16.mxu0 %v1960
        %2150 = vmatpush2.bf16.msra.mxu0 %v1959
        %2151 = vmatprep.subr.bf16.mxu0 %v1958
        %2152 = vmatpush2.bf16.msra.mxu0 %v1957
        %2153 = vmatprep.subr.bf16.mxu0 %v1956
        %2154 = vmatpush2.bf16.msra.mxu0 %v1955
        %2155 = vmatprep.subr.bf16.mxu0 %v1954
        %2156 = vmatpush2.bf16.msra.mxu0 %v1953
        %2157 = vmatprep.subr.bf16.mxu0 %v1952
        %2158 = vmatpush2.bf16.msra.mxu0 %v1951
        %2159 = vmatprep.subr.bf16.mxu0 %v1950
        %2160 = vmatpush2.bf16.msra.mxu0 %v1949
        %2161 = vmatprep.subr.bf16.mxu0 %v1948
        %2162 = vmatpush2.bf16.msra.mxu0 %v1947
        %2163 = vmatprep.subr.bf16.mxu0 %v1946
        %2164 = vmatpush2.bf16.msra.mxu0 %v1945
        %2165 = vmatprep.mubr.bf16.mxu0 %v1511
        %2166 = vmatmul.mubr.bf16.gmra.mxu0 %v1510
        %v2167 = vpop.f32.mrf.mxu0
        %v2168 = vadd.f32 %v1622, %v2167
        %v2169 = vpop.f32.mrf.mxu0
        %v2170 = vadd.f32 %v1626, %v2169
        %v2171 = vpop.f32.mrf.mxu0
        %v2172 = vadd.f32 %v1622, %v2171
        %v2173 = vpop.f32.mrf.mxu0
        %v2174 = vadd.f32 %v1626, %v2173
        %2175 = vdwg.mxu0
        %2176 = vmatprep.subr.bf16.mxu0 %v1976
        %2177 = vmatpush1.bf16.msra.mxu0 %v1975
        %2178 = vmatprep.subr.bf16.mxu0 %v1974
        %2179 = vmatpush1.bf16.msra.mxu0 %v1973
        %2180 = vmatprep.subr.bf16.mxu0 %v1972
        %2181 = vmatpush1.bf16.msra.mxu0 %v1971
        %2182 = vmatprep.subr.bf16.mxu0 %v1970
        %2183 = vmatpush1.bf16.msra.mxu0 %v1969
        %2184 = vmatprep.subr.bf16.mxu0 %v1968
        %2185 = vmatpush1.bf16.msra.mxu0 %v1967
        %2186 = vmatprep.subr.bf16.mxu0 %v1966
        %2187 = vmatpush1.bf16.msra.mxu0 %v1965
        %2188 = vmatprep.subr.bf16.mxu0 %v1964
        %2189 = vmatpush1.bf16.msra.mxu0 %v1963
        %2190 = vmatprep.subr.bf16.mxu0 %v1962
        %2191 = vmatpush1.bf16.msra.mxu0 %v1961
        %2192 = vmatprep.subr.bf16.mxu0 %v1992
        %2193 = vmatpush2.bf16.msra.mxu0 %v1991
        %2194 = vmatprep.subr.bf16.mxu0 %v1990
        %2195 = vmatpush2.bf16.msra.mxu0 %v1989
        %2196 = vmatprep.subr.bf16.mxu0 %v1988
        %2197 = vmatpush2.bf16.msra.mxu0 %v1987
        %2198 = vmatprep.subr.bf16.mxu0 %v1986
        %2199 = vmatpush2.bf16.msra.mxu0 %v1985
        %2200 = vmatprep.subr.bf16.mxu0 %v1984
        %2201 = vmatpush2.bf16.msra.mxu0 %v1983
        %2202 = vmatprep.subr.bf16.mxu0 %v1982
        %2203 = vmatpush2.bf16.msra.mxu0 %v1981
        %2204 = vmatprep.subr.bf16.mxu0 %v1980
        %2205 = vmatpush2.bf16.msra.mxu0 %v1979
        %2206 = vmatprep.subr.bf16.mxu0 %v1978
        %2207 = vmatpush2.bf16.msra.mxu0 %v1977
        %2208 = vmatprep.mubr.bf16.mxu0 %v1513
        %2209 = vmatmul.mubr.bf16.gmra.mxu0 %v1512
        %v2210 = vpop.f32.mrf.mxu0
        %v2211 = vadd.f32 %v2168, %v2210
        %v2212 = vpop.f32.mrf.mxu0
        %v2213 = vadd.f32 %v2170, %v2212
        %v2214 = vpop.f32.mrf.mxu0
        %v2215 = vadd.f32 %v2172, %v2214
        %v2216 = vpop.f32.mrf.mxu0
        %v2217 = vadd.f32 %v2174, %v2216
        %2218 = vdwg.mxu0
        %2219 = vmatprep.subr.bf16.mxu0 %v2008
        %2220 = vmatpush1.bf16.msra.mxu0 %v2007
        %2221 = vmatprep.subr.bf16.mxu0 %v2006
        %2222 = vmatpush1.bf16.msra.mxu0 %v2005
        %2223 = vmatprep.subr.bf16.mxu0 %v2004
        %2224 = vmatpush1.bf16.msra.mxu0 %v2003
        %2225 = vmatprep.subr.bf16.mxu0 %v2002
        %2226 = vmatpush1.bf16.msra.mxu0 %v2001
        %2227 = vmatprep.subr.bf16.mxu0 %v2000
        %2228 = vmatpush1.bf16.msra.mxu0 %v1999
        %2229 = vmatprep.subr.bf16.mxu0 %v1998
        %2230 = vmatpush1.bf16.msra.mxu0 %v1997
        %2231 = vmatprep.subr.bf16.mxu0 %v1996
        %2232 = vmatpush1.bf16.msra.mxu0 %v1995
        %2233 = vmatprep.subr.bf16.mxu0 %v1994
        %2234 = vmatpush1.bf16.msra.mxu0 %v1993
        %2235 = vmatprep.subr.bf16.mxu0 %v2024
        %2236 = vmatpush2.bf16.msra.mxu0 %v2023
        %2237 = vmatprep.subr.bf16.mxu0 %v2022
        %2238 = vmatpush2.bf16.msra.mxu0 %v2021
        %2239 = vmatprep.subr.bf16.mxu0 %v2020
        %2240 = vmatpush2.bf16.msra.mxu0 %v2019
        %2241 = vmatprep.subr.bf16.mxu0 %v2018
        %2242 = vmatpush2.bf16.msra.mxu0 %v2017
        %2243 = vmatprep.subr.bf16.mxu0 %v2016
        %2244 = vmatpush2.bf16.msra.mxu0 %v2015
        %2245 = vmatprep.subr.bf16.mxu0 %v2014
        %2246 = vmatpush2.bf16.msra.mxu0 %v2013
        %2247 = vmatprep.subr.bf16.mxu0 %v2012
        %2248 = vmatpush2.bf16.msra.mxu0 %v2011
        %2249 = vmatprep.subr.bf16.mxu0 %v2010
        %2250 = vmatpush2.bf16.msra.mxu0 %v2009
        %2251 = vmatprep.mubr.bf16.mxu0 %v1515
        %2252 = vmatmul.mubr.bf16.gmra.mxu0 %v1514
        %v2253 = vpop.f32.mrf.mxu0
        %v2254 = vadd.f32 %v2211, %v2253
        %v2255 = vpop.f32.mrf.mxu0
        %v2256 = vadd.f32 %v2213, %v2255
        %v2257 = vpop.f32.mrf.mxu0
        %v2258 = vadd.f32 %v2215, %v2257
        %v2259 = vpop.f32.mrf.mxu0
        %v2260 = vadd.f32 %v2217, %v2259
        %2261 = vdwg.mxu0
        %2262 = vmatprep.subr.bf16.mxu0 0
        %2263 = vmatpush1.bf16.msra.mxu0 0
        %2264 = vmatprep.subr.bf16.mxu0 0
        %2265 = vmatpush1.bf16.msra.mxu0 0
        %2266 = vmatprep.subr.bf16.mxu0 0
        %2267 = vmatpush1.bf16.msra.mxu0 0
        %2268 = vmatprep.subr.bf16.mxu0 0
        %2269 = vmatpush1.bf16.msra.mxu0 0
        %2270 = vmatprep.subr.bf16.mxu0 0
        %2271 = vmatpush1.bf16.msra.mxu0 0
        %2272 = vmatprep.subr.bf16.mxu0 0
        %2273 = vmatpush1.bf16.msra.mxu0 0
        %2274 = vmatprep.subr.bf16.mxu0 %v2028
        %2275 = vmatpush1.bf16.msra.mxu0 %v2027
        %2276 = vmatprep.subr.bf16.mxu0 %v2026
        %2277 = vmatpush1.bf16.msra.mxu0 %v2025
        %2278 = vmatprep.subr.bf16.mxu0 0
        %2279 = vmatpush2.bf16.msra.mxu0 0
        %2280 = vmatprep.subr.bf16.mxu0 0
        %2281 = vmatpush2.bf16.msra.mxu0 0
        %2282 = vmatprep.subr.bf16.mxu0 0
        %2283 = vmatpush2.bf16.msra.mxu0 0
        %2284 = vmatprep.subr.bf16.mxu0 0
        %2285 = vmatpush2.bf16.msra.mxu0 0
        %2286 = vmatprep.subr.bf16.mxu0 0
        %2287 = vmatpush2.bf16.msra.mxu0 0
        %2288 = vmatprep.subr.bf16.mxu0 0
        %2289 = vmatpush2.bf16.msra.mxu0 0
        %2290 = vmatprep.subr.bf16.mxu0 0
        %2291 = vmatpush2.bf16.msra.mxu0 0
        %2292 = vmatprep.subr.bf16.mxu0 0
        %2293 = vmatpush2.bf16.msra.mxu0 0
        %2294 = vmatprep.mubr.bf16.mxu0 0
        %2295 = vmatmul.mubr.bf16.gmra.mxu0 %v2131
        %v2296 = vpop.f32.mrf.mxu0
        %v2297 = vadd.f32 %v2254, %v2296
        %v2298 = vpop.f32.mrf.mxu0
        %v2299 = vadd.f32 %v2256, %v2298
        %v2300 = vpop.f32.mrf.mxu0
        %v2301 = vadd.f32 %v2258, %v2300
        %v2302 = vpop.f32.mrf.mxu0
        %v2303 = vadd.f32 %v2260, %v2302
        %2304 = vdwg.mxu0
        %v2305 = vmax.f32 %v2297, 0.0
        %v2306 = vmax.f32 %v2299, 0.0
        %v2307 = vmax.f32 %v2301, 0.0
        %v2308 = vmax.f32 %v2303, 0.0
        %v2309 = vpack.c.bf16 %v1494, %v1492
        %v2310 = vpack.c.bf16 %v1495, %v1493
        %v2311 = vld [vmem:[#allocation10] sm:$0xf]
        %v2312 = vld [vmem:[#allocation10 + $0x4] sm:$0xf]
        %v2313 = vld [vmem:[#allocation10 + $0x8] sm:$0xf]
        %v2314 = vld [vmem:[#allocation10 + $0xc] sm:$0xf]
        %v2315 = vld [vmem:[#allocation10 + $0x10] sm:$0xf]
        %v2316 = vld [vmem:[#allocation10 + $0x14] sm:$0xf]
        %v2317 = vld [vmem:[#allocation10 + $0x18] sm:$0xf]
        %v2318 = vld [vmem:[#allocation10 + $0x1c] sm:$0xf]
        %v2319 = vld [vmem:[#allocation10 + $0x20] sm:$0xf]
        %v2320 = vld [vmem:[#allocation10 + $0x24] sm:$0xf]
        %v2321 = vld [vmem:[#allocation10 + $0x28] sm:$0xf]
        %v2322 = vld [vmem:[#allocation10 + $0x2c] sm:$0xf]
        %v2323 = vld [vmem:[#allocation10 + $0x30] sm:$0xf]
        %v2324 = vld [vmem:[#allocation10 + $0x34] sm:$0xf]
        %v2325 = vld [vmem:[#allocation10 + $0x38] sm:$0xf]
        %v2326 = vld [vmem:[#allocation10 + $0x3c] sm:$0xf]
        %v2327 = vld [vmem:[#allocation10 + $0x40] sm:$0xf]
        %v2328 = vld [vmem:[#allocation10 + $0x44] sm:$0xf]
        %v2329 = vld [vmem:[#allocation10 + $0x48] sm:$0xf]
        %v2330 = vld [vmem:[#allocation10 + $0x4c] sm:$0xf]
        %v2331 = vld [vmem:[#allocation10 + $0x50] sm:$0xf]
        %v2332 = vld [vmem:[#allocation10 + $0x54] sm:$0xf]
        %v2333 = vld [vmem:[#allocation10 + $0x58] sm:$0xf]
        %v2334 = vld [vmem:[#allocation10 + $0x5c] sm:$0xf]
        %v2335 = vld [vmem:[#allocation10 + $0x60] sm:$0xf]
        %v2336 = vld [vmem:[#allocation10 + $0x64] sm:$0xf]
        %v2337 = vld [vmem:[#allocation10 + $0x68] sm:$0xf]
        %v2338 = vld [vmem:[#allocation10 + $0x6c] sm:$0xf]
        %v2339 = vld [vmem:[#allocation10 + $0x70] sm:$0xf]
        %v2340 = vld [vmem:[#allocation10 + $0x74] sm:$0xf]
        %v2341 = vld [vmem:[#allocation10 + $0x78] sm:$0xf]
        %v2342 = vld [vmem:[#allocation10 + $0x7c] sm:$0xf]
        %v2343 = vpack.c.bf16 %v2307, %v2305
        %v2344 = vpack.c.bf16 %v2308, %v2306
        %v2345 = vld [vmem:[#allocation11] sm:$0xf]
        %v2346 = vld [vmem:[#allocation11 + $0x4] sm:$0xf]
        %v2347 = vld [vmem:[#allocation11 + $0x8] sm:$0xf]
        %v2348 = vld [vmem:[#allocation11 + $0xc] sm:$0xf]
        %v2349 = vld [vmem:[#allocation11 + $0x10] sm:$0xf]
        %v2350 = vld [vmem:[#allocation11 + $0x14] sm:$0xf]
        %v2351 = vld [vmem:[#allocation11 + $0x18] sm:$0xf]
        %v2352 = vld [vmem:[#allocation11 + $0x1c] sm:$0xf]
        %v2353 = vld [vmem:[#allocation11 + $0x20] sm:$0xf]
        %v2354 = vld [vmem:[#allocation11 + $0x24] sm:$0xf]
        %v2355 = vld [vmem:[#allocation11 + $0x28] sm:$0xf]
        %v2356 = vld [vmem:[#allocation11 + $0x2c] sm:$0xf]
        %v2357 = vld [vmem:[#allocation11 + $0x30] sm:$0xf]
        %v2358 = vld [vmem:[#allocation11 + $0x34] sm:$0xf]
        %v2359 = vld [vmem:[#allocation11 + $0x38] sm:$0xf]
        %v2360 = vld [vmem:[#allocation11 + $0x3c] sm:$0xf]
        %v2361 = vld [vmem:[#allocation11 + $0x40] sm:$0xf]
        %v2362 = vld [vmem:[#allocation11 + $0x44] sm:$0xf]
        %v2363 = vld [vmem:[#allocation11 + $0x48] sm:$0xf]
        %v2364 = vld [vmem:[#allocation11 + $0x4c] sm:$0xf]
        %v2365 = vld [vmem:[#allocation11 + $0x50] sm:$0xf]
        %v2366 = vld [vmem:[#allocation11 + $0x54] sm:$0xf]
        %v2367 = vld [vmem:[#allocation11 + $0x58] sm:$0xf]
        %v2368 = vld [vmem:[#allocation11 + $0x5c] sm:$0xf]
        %v2369 = vld [vmem:[#allocation11 + $0x60] sm:$0xf]
        %v2370 = vld [vmem:[#allocation11 + $0x64] sm:$0xf]
        %v2371 = vld [vmem:[#allocation11 + $0x68] sm:$0xf]
        %v2372 = vld [vmem:[#allocation11 + $0x6c] sm:$0xf]
        %v2373 = vld [vmem:[#allocation11 + $0x70] sm:$0xf]
        %v2374 = vld [vmem:[#allocation11 + $0x74] sm:$0xf]
        %v2375 = vld [vmem:[#allocation11 + $0x78] sm:$0xf]
        %v2376 = vld [vmem:[#allocation11 + $0x7c] sm:$0xf]
        %v2409 = vunpack.c.l.b16 %v2345
        %v2410 = vunpack.c.l.b16 %v2346
        %v2411 = vunpack.c.l.b16 %v2347
        %v2412 = vunpack.c.l.b16 %v2348
        %v2413 = vunpack.c.l.b16 %v2349
        %v2414 = vunpack.c.l.b16 %v2350
        %v2415 = vunpack.c.l.b16 %v2351
        %v2416 = vunpack.c.l.b16 %v2352
        %v2417 = vunpack.c.l.b16 %v2353
        %v2418 = vunpack.c.l.b16 %v2354
        %v2419 = vunpack.c.l.b16 %v2355
        %v2420 = vunpack.c.l.b16 %v2356
        %v2421 = vunpack.c.l.b16 %v2357
        %v2422 = vunpack.c.l.b16 %v2358
        %v2423 = vunpack.c.l.b16 %v2359
        %v2424 = vunpack.c.l.b16 %v2360
        %v2425 = vunpack.c.l.b16 %v2361
        %v2426 = vunpack.c.l.b16 %v2362
        %v2427 = vunpack.c.l.b16 %v2363
        %v2428 = vunpack.c.l.b16 %v2364
        %v2429 = vunpack.c.l.b16 %v2365
        %v2430 = vunpack.c.l.b16 %v2366
        %v2431 = vunpack.c.l.b16 %v2367
        %v2432 = vunpack.c.l.b16 %v2368
        %v2433 = vunpack.c.l.b16 %v2369
        %v2434 = vunpack.c.l.b16 %v2370
        %v2435 = vunpack.c.l.b16 %v2371
        %v2436 = vunpack.c.l.b16 %v2372
        %v2437 = vunpack.c.l.b16 %v2373
        %v2438 = vunpack.c.l.b16 %v2374
        %v2439 = vunpack.c.l.b16 %v2375
        %v2440 = vunpack.c.l.b16 %v2376
        %v2441 = vpack.c.b16 %v2410, %v2409
        %v2442 = vpack.c.b16 %v2412, %v2411
        %v2443 = vpack.c.b16 %v2414, %v2413
        %v2444 = vpack.c.b16 %v2416, %v2415
        %v2445 = vpack.c.b16 %v2418, %v2417
        %v2446 = vpack.c.b16 %v2420, %v2419
        %v2447 = vpack.c.b16 %v2422, %v2421
        %v2448 = vpack.c.b16 %v2424, %v2423
        %v2449 = vpack.c.b16 %v2426, %v2425
        %v2450 = vpack.c.b16 %v2428, %v2427
        %v2451 = vpack.c.b16 %v2430, %v2429
        %v2452 = vpack.c.b16 %v2432, %v2431
        %v2453 = vpack.c.b16 %v2434, %v2433
        %v2454 = vpack.c.b16 %v2436, %v2435
        %v2455 = vpack.c.b16 %v2438, %v2437
        %v2456 = vpack.c.b16 %v2440, %v2439
        %2473 = vmatprep.subr.bf16.mxu0 0
        %2474 = vmatpush1.bf16.msra.mxu0 %v2448
        %2475 = vmatprep.subr.bf16.mxu0 0
        %2476 = vmatpush1.bf16.msra.mxu0 %v2447
        %2477 = vmatprep.subr.bf16.mxu0 0
        %2478 = vmatpush1.bf16.msra.mxu0 %v2446
        %2479 = vmatprep.subr.bf16.mxu0 0
        %2480 = vmatpush1.bf16.msra.mxu0 %v2445
        %2481 = vmatprep.subr.bf16.mxu0 0
        %2482 = vmatpush1.bf16.msra.mxu0 %v2444
        %2483 = vmatprep.subr.bf16.mxu0 0
        %2484 = vmatpush1.bf16.msra.mxu0 %v2443
        %2485 = vmatprep.subr.bf16.mxu0 0
        %2486 = vmatpush1.bf16.msra.mxu0 %v2442
        %2487 = vmatprep.subr.bf16.mxu0 0
        %2488 = vmatpush1.bf16.msra.mxu0 %v2441
        %2489 = vmatprep.subr.bf16.mxu0 0
        %2490 = vmatpush2.bf16.msra.mxu0 %v2456
        %2491 = vmatprep.subr.bf16.mxu0 0
        %2492 = vmatpush2.bf16.msra.mxu0 %v2455
        %2493 = vmatprep.subr.bf16.mxu0 0
        %2494 = vmatpush2.bf16.msra.mxu0 %v2454
        %2495 = vmatprep.subr.bf16.mxu0 0
        %2496 = vmatpush2.bf16.msra.mxu0 %v2453
        %2497 = vmatprep.subr.bf16.mxu0 0
        %2498 = vmatpush2.bf16.msra.mxu0 %v2452
        %2499 = vmatprep.subr.bf16.mxu0 0
        %2500 = vmatpush2.bf16.msra.mxu0 %v2451
        %2501 = vmatprep.subr.bf16.mxu0 0
        %2502 = vmatpush2.bf16.msra.mxu0 %v2450
        %2503 = vmatprep.subr.bf16.mxu0 0
        %2504 = vmatpush2.bf16.msra.mxu0 %v2449
        %2505 = vmatprep.mubr.bf16.mxu0 %v2344
        %2506 = vmatmul.mubr.bf16.gmra.mxu0 %v2343
        %v2507 = vpop.f32.mrf.mxu0
        %v2508 = vadd.f32 0.0, %v2507
        %v2509 = vpop.f32.mrf.mxu0
        %v2510 = vpop.f32.mrf.mxu0
        %v2511 = vadd.f32 0.0, %v2510
        %v2512 = vpop.f32.mrf.mxu0
        %2513 = vdwg.mxu0
        %v2546 = vunpack.c.l.b16 %v2311
        %v2547 = vunpack.c.l.b16 %v2312
        %v2548 = vunpack.c.l.b16 %v2313
        %v2549 = vunpack.c.l.b16 %v2314
        %v2550 = vunpack.c.l.b16 %v2315
        %v2551 = vunpack.c.l.b16 %v2316
        %v2552 = vunpack.c.l.b16 %v2317
        %v2553 = vunpack.c.l.b16 %v2318
        %v2554 = vunpack.c.l.b16 %v2319
        %v2555 = vunpack.c.l.b16 %v2320
        %v2556 = vunpack.c.l.b16 %v2321
        %v2557 = vunpack.c.l.b16 %v2322
        %v2558 = vunpack.c.l.b16 %v2323
        %v2559 = vunpack.c.l.b16 %v2324
        %v2560 = vunpack.c.l.b16 %v2325
        %v2561 = vunpack.c.l.b16 %v2326
        %v2562 = vunpack.c.l.b16 %v2327
        %v2563 = vunpack.c.l.b16 %v2328
        %v2564 = vunpack.c.l.b16 %v2329
        %v2565 = vunpack.c.l.b16 %v2330
        %v2566 = vunpack.c.l.b16 %v2331
        %v2567 = vunpack.c.l.b16 %v2332
        %v2568 = vunpack.c.l.b16 %v2333
        %v2569 = vunpack.c.l.b16 %v2334
        %v2570 = vunpack.c.l.b16 %v2335
        %v2571 = vunpack.c.l.b16 %v2336
        %v2572 = vunpack.c.l.b16 %v2337
        %v2573 = vunpack.c.l.b16 %v2338
        %v2574 = vunpack.c.l.b16 %v2339
        %v2575 = vunpack.c.l.b16 %v2340
        %v2576 = vunpack.c.l.b16 %v2341
        %v2577 = vunpack.c.l.b16 %v2342
        %v2578 = vpack.c.b16 %v2547, %v2546
        %v2579 = vpack.c.b16 %v2549, %v2548
        %v2580 = vpack.c.b16 %v2551, %v2550
        %v2581 = vpack.c.b16 %v2553, %v2552
        %v2582 = vpack.c.b16 %v2555, %v2554
        %v2583 = vpack.c.b16 %v2557, %v2556
        %v2584 = vpack.c.b16 %v2559, %v2558
        %v2585 = vpack.c.b16 %v2561, %v2560
        %v2586 = vpack.c.b16 %v2563, %v2562
        %v2587 = vpack.c.b16 %v2565, %v2564
        %v2588 = vpack.c.b16 %v2567, %v2566
        %v2589 = vpack.c.b16 %v2569, %v2568
        %v2590 = vpack.c.b16 %v2571, %v2570
        %v2591 = vpack.c.b16 %v2573, %v2572
        %v2592 = vpack.c.b16 %v2575, %v2574
        %v2593 = vpack.c.b16 %v2577, %v2576
        %2610 = vmatprep.subr.bf16.mxu0 0
        %2611 = vmatpush1.bf16.msra.mxu0 %v2585
        %2612 = vmatprep.subr.bf16.mxu0 0
        %2613 = vmatpush1.bf16.msra.mxu0 %v2584
        %2614 = vmatprep.subr.bf16.mxu0 0
        %2615 = vmatpush1.bf16.msra.mxu0 %v2583
        %2616 = vmatprep.subr.bf16.mxu0 0
        %2617 = vmatpush1.bf16.msra.mxu0 %v2582
        %2618 = vmatprep.subr.bf16.mxu0 0
        %2619 = vmatpush1.bf16.msra.mxu0 %v2581
        %2620 = vmatprep.subr.bf16.mxu0 0
        %2621 = vmatpush1.bf16.msra.mxu0 %v2580
        %2622 = vmatprep.subr.bf16.mxu0 0
        %2623 = vmatpush1.bf16.msra.mxu0 %v2579
        %2624 = vmatprep.subr.bf16.mxu0 0
        %2625 = vmatpush1.bf16.msra.mxu0 %v2578
        %2626 = vmatprep.subr.bf16.mxu0 0
        %2627 = vmatpush2.bf16.msra.mxu0 %v2593
        %2628 = vmatprep.subr.bf16.mxu0 0
        %2629 = vmatpush2.bf16.msra.mxu0 %v2592
        %2630 = vmatprep.subr.bf16.mxu0 0
        %2631 = vmatpush2.bf16.msra.mxu0 %v2591
        %2632 = vmatprep.subr.bf16.mxu0 0
        %2633 = vmatpush2.bf16.msra.mxu0 %v2590
        %2634 = vmatprep.subr.bf16.mxu0 0
        %2635 = vmatpush2.bf16.msra.mxu0 %v2589
        %2636 = vmatprep.subr.bf16.mxu0 0
        %2637 = vmatpush2.bf16.msra.mxu0 %v2588
        %2638 = vmatprep.subr.bf16.mxu0 0
        %2639 = vmatpush2.bf16.msra.mxu0 %v2587
        %2640 = vmatprep.subr.bf16.mxu0 0
        %2641 = vmatpush2.bf16.msra.mxu0 %v2586
        %2642 = vmatprep.mubr.bf16.mxu0 %v2310
        %2643 = vmatmul.mubr.bf16.gmra.mxu0 %v2309
        %v2644 = vpop.f32.mrf.mxu0
        %v2645 = vadd.f32 %v2508, %v2644
        %v2646 = vpop.f32.mrf.mxu0
        %v2647 = vpop.f32.mrf.mxu0
        %v2648 = vadd.f32 %v2511, %v2647
        %v2649 = vpop.f32.mrf.mxu0
        %2650 = vdwg.mxu0
        %v2651 = vld [vmem:[%s8] sm:$0x1]
        %v2653 = vlaneseq
        %v2654 = vshrl.u32 %v2653, 7
        %v2655 = vsub.s32 0, %v2654
        %v2656 = vrot.slane %v2651, %v2655
        %v2658 = vadd.f32 %v2645, %v2656
        %v2659 = vadd.f32 %v2648, %v2656
        %v2660 = vmax.f32 %v2658, 0.0
        %v2661 = vmax.f32 %v2659, 0.0
        %v2662 = vpack.c.bf16 %v2661, %v2660
        %v2663 = vld [vmem:[#allocation13] sm:$0xf]
        %v2664 = vld [vmem:[#allocation13 + $0x4] sm:$0xf]
        %v2665 = vld [vmem:[#allocation13 + $0x8] sm:$0xf]
        %v2666 = vld [vmem:[#allocation13 + $0xc] sm:$0xf]
        %v2667 = vld [vmem:[#allocation13 + $0x10] sm:$0xf]
        %v2668 = vld [vmem:[#allocation13 + $0x14] sm:$0xf]
        %v2669 = vld [vmem:[#allocation13 + $0x18] sm:$0xf]
        %v2670 = vld [vmem:[#allocation13 + $0x1c] sm:$0xf]
        %v2671 = vld [vmem:[#allocation13 + $0x20] sm:$0xf]
        %v2672 = vld [vmem:[#allocation13 + $0x24] sm:$0xf]
        %v2673 = vld [vmem:[#allocation13 + $0x28] sm:$0xf]
        %v2674 = vld [vmem:[#allocation13 + $0x2c] sm:$0xf]
        %v2675 = vld [vmem:[#allocation13 + $0x30] sm:$0xf]
        %v2676 = vld [vmem:[#allocation13 + $0x34] sm:$0xf]
        %v2677 = vld [vmem:[#allocation13 + $0x38] sm:$0xf]
        %v2678 = vld [vmem:[#allocation13 + $0x3c] sm:$0xf]
        %v2679 = vld [vmem:[%s10] sm:$0x1]
        %v2681 = vlaneseq
        %v2682 = vshrl.u32 %v2681, 7
        %v2683 = vsub.s32 0, %v2682
        %v2684 = vrot.slane %v2679, %v2683
        %v2702 = vunpack.c.l.b16 %v2663
        %v2703 = vunpack.c.l.b16 %v2664
        %v2704 = vunpack.c.l.b16 %v2665
        %v2705 = vunpack.c.l.b16 %v2666
        %v2706 = vunpack.c.l.b16 %v2667
        %v2707 = vunpack.c.l.b16 %v2668
        %v2708 = vunpack.c.l.b16 %v2669
        %v2709 = vunpack.c.l.b16 %v2670
        %v2710 = vunpack.c.l.b16 %v2671
        %v2711 = vunpack.c.l.b16 %v2672
        %v2712 = vunpack.c.l.b16 %v2673
        %v2713 = vunpack.c.l.b16 %v2674
        %v2714 = vunpack.c.l.b16 %v2675
        %v2715 = vunpack.c.l.b16 %v2676
        %v2716 = vunpack.c.l.b16 %v2677
        %v2717 = vunpack.c.l.b16 %v2678
        %v2718 = vpack.c.b16 %v2703, %v2702
        %v2719 = vpack.c.b16 %v2705, %v2704
        %v2720 = vpack.c.b16 %v2707, %v2706
        %v2721 = vpack.c.b16 %v2709, %v2708
        %v2722 = vpack.c.b16 %v2711, %v2710
        %v2723 = vpack.c.b16 %v2713, %v2712
        %v2724 = vpack.c.b16 %v2715, %v2714
        %v2725 = vpack.c.b16 %v2717, %v2716
        %2734 = vmatprep.subr.bf16.mxu0 0
        %2735 = vmatpush1.bf16.msra.mxu0 %v2725
        %2736 = vmatprep.subr.bf16.mxu0 0
        %2737 = vmatpush1.bf16.msra.mxu0 %v2724
        %2738 = vmatprep.subr.bf16.mxu0 0
        %2739 = vmatpush1.bf16.msra.mxu0 %v2723
        %2740 = vmatprep.subr.bf16.mxu0 0
        %2741 = vmatpush1.bf16.msra.mxu0 %v2722
        %2742 = vmatprep.subr.bf16.mxu0 0
        %2743 = vmatpush1.bf16.msra.mxu0 %v2721
        %2744 = vmatprep.subr.bf16.mxu0 0
        %2745 = vmatpush1.bf16.msra.mxu0 %v2720
        %2746 = vmatprep.subr.bf16.mxu0 0
        %2747 = vmatpush1.bf16.msra.mxu0 %v2719
        %2748 = vmatprep.subr.bf16.mxu0 0
        %2749 = vmatpush1.bf16.msra.mxu0 %v2718
        %2750 = vmatprep.subr.bf16.mxu0 0
        %2751 = vmatpush2.bf16.msra.mxu0 0
        %2752 = vmatprep.subr.bf16.mxu0 0
        %2753 = vmatpush2.bf16.msra.mxu0 0
        %2754 = vmatprep.subr.bf16.mxu0 0
        %2755 = vmatpush2.bf16.msra.mxu0 0
        %2756 = vmatprep.subr.bf16.mxu0 0
        %2757 = vmatpush2.bf16.msra.mxu0 0
        %2758 = vmatprep.subr.bf16.mxu0 0
        %2759 = vmatpush2.bf16.msra.mxu0 0
        %2760 = vmatprep.subr.bf16.mxu0 0
        %2761 = vmatpush2.bf16.msra.mxu0 0
        %2762 = vmatprep.subr.bf16.mxu0 0
        %2763 = vmatpush2.bf16.msra.mxu0 0
        %2764 = vmatprep.subr.bf16.mxu0 0
        %2765 = vmatpush2.bf16.msra.mxu0 0
        %2766 = vmatprep.mubr.bf16.mxu0 0
        %2767 = vmatmul.mubr.bf16.gmra.mxu0 %v2662
        %v2768 = vpop.f32.mrf.mxu0
        %v2769 = vadd.f32 %v2684, %v2768
        %v2770 = vpop.f32.mrf.mxu0
        %v2771 = vpop.f32.mrf.mxu0
        %v2772 = vadd.f32 %v2684, %v2771
        %v2773 = vpop.f32.mrf.mxu0
        %2774 = vdwg.mxu0
        %2775 = vst [vmem:[%s518] sm:$0xff] %v2769
        %2776 = vst [vmem:[%s518 + $0x8] sm:$0xff] %v2772
        %s2777 = sand.u32 %s282, 1
        %s2778 = scalar_lea.sflag [#allocation4], %s2777
        %s2779 = sand.u32 %s282, 1
        %s2780 = smul.addr %s2779, 16
        %s2781 = scalar_lea.vmem [#allocation14], %s2780
        // Predicated region
        $region93: #{tpu_custom_call.1} parent=63 // pred_check
          %p2782 = pneg %p292
        $region94: #{tpu_custom_call.1} parent=63 // pred_check_branch
          %2784 = sbr.rel (%p2782) target = $region96
        $region95: #{tpu_custom_call.1} parent=63 // pred_region
          %s2785 = smul.u32 2, %s33
          %s2787 = ssub.s32 256, 256
          %2788 = vsyncadd %s2778, %s2787
          %s2789 = smul.addr %s2785, 128
          %s2790 = scalar_lea.hbm %s11, %s2789
          %s2791 = sshll.u32 %s2781, 4
          %s2792 = int_to_ptr.vmem [resolvable:$true] %s2791
          %2797 = dma.vmem_to_hbm [thread:$0]  %s2792, 256, %s2790, %s2778, 128, 128, 8
        $region96: #{tpu_custom_call.1} parent=63 // pred_fallthru
          _
      $region64: #{tpu_custom_call.1} parent=5 // pred_fallthru
        _
      %p2798 = scmp.le.s32.totalorder 2, %s28
      // Predicated region
      $region97: #{tpu_custom_call.1} parent=5 // pred_check
        %p2799 = pneg %p2798
      $region98: #{tpu_custom_call.1} parent=5 // pred_check_branch
        %2801 = sbr.rel (%p2799) target = $region100
      $region99: #{tpu_custom_call.1} parent=5 // pred_region
        %s2802 = ssub.s32 %s28, 2
        // Predicated region
        $region101: #{tpu_custom_call.1} parent=99 // pred_check
          %p2803 = pneg %p298
        $region102: #{tpu_custom_call.1} parent=99 // pred_check_branch
          %2805 = sbr.rel (%p2803) target = $region104
        $region103: #{tpu_custom_call.1} parent=99 // pred_region
          %s2806 = sand.u32 %s283, 1
          %s2807 = scalar_lea.sflag [#allocation4], %s2806
          %s2808 = sand.u32 %s283, 1
          %s2809 = smul.addr %s2808, 16
          %s2810 = scalar_lea.vmem [#allocation14], %s2809
          %2811 = dma.done %s2807, 256
        $region104: #{tpu_custom_call.1} parent=99 // pred_fallthru
          _
      $region100: #{tpu_custom_call.1} parent=5 // pred_fallthru
        _
    $region6: #{tpu_custom_call.1} parent=1 // loop_footer
      %s32 = sadd.s32 1, %s28
    $region7: #{tpu_custom_call.1} parent=1 // loop_footer_branch
      %27 = sbr.rel target = $region3
    $region8: #{tpu_custom_call.1} parent=1 // loop_exit
      _
    %2812 = vsyncpa [#allocation3], 1
    %s2813 = scalar_lea.sflag [#allocation3], 1
    %2814 = vsyncpa %s2813, 1
    %2815 = vsyncpa [#allocation6], 1
    %s2816 = scalar_lea.sflag [#allocation6], 1
    %2817 = vsyncpa %s2816, 1
    %2818 = vsyncpa [#allocation9], 1
    %2819 = vsyncpa [#allocation12], 1
    %2820 = vsyncpa [#allocation4], 1
    %s2821 = scalar_lea.sflag [#allocation4], 1
    %2822 = vsyncpa %s2821, 1

</llo_original>
